<compile_context>
chip_gen: v7x
topology: tpu7x:2x2x1
jax: 0.10.0
libtpu: 0.0.40
codegen_flags: <defaults>
</compile_context>

<pallas_src>
import jax
import jax.numpy as jnp
from jax.experimental import pallas as pl
from jax.experimental.pallas import tpu as pltpu

# ---------------- constants (geoopt-style clamps, c = 1) --------------------
C = 1.0
SQRT_C = 1.0
MIN_NORM = 1e-5       # norm clamp
BALL_EPS = 4e-3       # float32 projection epsilon (geoopt PoincareBall)
LN_EPS = 1e-5
LANE = 128
SUBLANE = 8


def _round_up(a, m):
    return ((a + m - 1) // m) * m


# ---------------- in-kernel hyperbolic helpers ------------------------------
def _recip(x):
    # Used only for per-row scale denominators where a small *relative* error
    # is harmless -> EUP approximate reciprocal (nearly free slot).
    return pl.reciprocal(x, approx=True)


def _recip_refined(x):
    # EUP estimate + one Newton step on the VPU: near-exact reciprocal, used
    # where the review flagged accuracy (mobius_add denominator, artanh ratio).
    r = pl.reciprocal(x, approx=True)
    return r * (2.0 - x * r)


def _artanh(x):
    x = jnp.clip(x, -1.0 + 1e-7, 1e-7 * -1.0 + 1.0)   # clip away from +/-1
    # divide -> EUP reciprocal (+ Newton refinement for accuracy), single log.
    return 0.5 * jnp.log((1.0 + x) * _recip_refined(1.0 - x))


def _log0_scale(h2):
    """logmap0(h) = scale * h, scale derived from carried ||h||^2 (no reduce)."""
    hn = jnp.maximum(jnp.sqrt(h2), MIN_NORM)
    return _artanh(SQRT_C * hn) * _recip(SQRT_C * hn)


def _exp0_carry(u, u2):
    """expmap0(u) together with its carried sum-of-squares."""
    un = jnp.maximum(jnp.sqrt(u2), MIN_NORM)
    sc = jnp.tanh(SQRT_C * un) * _recip(SQRT_C * un)
    return u * sc, u2 * (sc * sc)


def _projx_carry(a, a2):
    """Project onto the ball; carry the rescaled sum-of-squares consistently."""
    an = jnp.maximum(jnp.sqrt(a2), MIN_NORM)
    maxnorm = (1.0 - BALL_EPS) / SQRT_C
    sc = jnp.where(an > maxnorm, maxnorm * _recip(an), jnp.ones_like(an))
    return a * sc, a2 * (sc * sc)


# ------------------------------ fused kernel --------------------------------
def _make_fused_kernel(layer_meta):
    """layer_meta: static tuple of (d_out, dpo, has_norm, has_spare) per layer."""

    def kernel(b2_ref, x_ref, *refs):
        o_ref = refs[-1]
        prefs = refs[:-1]

        x = x_ref[...].astype(jnp.float32)
        x2 = jnp.sum(x * x, axis=-1, keepdims=True)              # reduce (once)

        i = 0
        for li, (d_out, dpo, has_norm, has_spare) in enumerate(layer_meta):
            wt = prefs[i][...]; i += 1                            # bf16 (K, dpo)
            bh = prefs[i][...].astype(jnp.float32); i += 1        # (1, dpo) = expmap0(bias)
            if has_norm:
                g = prefs[i][...].astype(jnp.float32); i += 1     # (1, dpo) LN gamma (0-padded)
                be = prefs[i][...].astype(jnp.float32); i += 1    # (1, dpo) LN beta  (0-padded)
            b2 = b2_ref[li]                                       # SMEM scalar ||expmap0(bias)||^2

            valid = None
            if has_spare:                                         # lanes < d_out are real
                valid = (jax.lax.broadcasted_iota(jnp.int32, (1, dpo), 1)
                         < d_out).astype(jnp.float32)

            # ---- mobius_matvec (MXU, bf16 operands / f32 accumulate) ----
            xn = jnp.maximum(jnp.sqrt(x2), MIN_NORM)
            mx = jnp.dot(x.astype(jnp.bfloat16), wt,
                         preferred_element_type=jnp.float32)
            if has_spare:
                mxb = mx[:, dpo - 1:dpo]       # fused <W x, expmap0(b)> column
                mx = mx * valid                # zero padding lanes (incl. bias col)
            mx2 = jnp.sum(mx * mx, axis=-1, keepdims=True)        # reduce
            mxn = jnp.maximum(jnp.sqrt(mx2), MIN_NORM)
            s = (jnp.tanh(mxn * _recip(xn) * _artanh(SQRT_C * xn))
                 * _recip(SQRT_C * mxn))
            # geoopt contract: rows with Wx == 0 map to 0.  With bf16 operands,
            # rows whose products underflow to exactly 0 also take this branch,
            # which matches the "close to zero -> zero" semantics.
            s = jnp.where(mx2 == 0.0, jnp.zeros_like(s), s)
            h = s * mx
            h2 = (s * s) * mx2                                    # carried ||h||^2

            # ---- mobius_add(h, expmap0(bias)) ----
            if has_spare:
                xy = s * mxb                                      # <h,bh>, no XLU reduce
            else:
                xy = jnp.sum(h * bh, axis=-1, keepdims=True)      # reduce (fallback)
            al = 1.0 + 2.0 * C * xy + C * b2
            bt = 1.0 - C * h2
            den = jnp.maximum(1.0 + 2.0 * C * xy + C * C * h2 * b2, MIN_NORM)
            inv_den = _recip_refined(den)       # accurate: feeds a and carried a2
            a = (al * h + bt * bh) * inv_den
            # ||a||^2 from already-known inner products (no new reduction).
            # NOTE: carried sums-of-squares drift slightly vs the exact norm on
            # very deep stacks; validated at this depth against the margin check.
            a2 = jnp.maximum(
                (al * al * h2 + 2.0 * al * bt * xy + bt * bt * b2)
                * (inv_den * inv_den), 0.0)
            h, h2 = _projx_carry(a, a2)

            if has_norm:
                # ---- MobiusAct(relu): expmap0(relu(logmap0(h))) ----
                u = jnp.maximum(h * _log0_scale(h2), 0.0)
                u2 = jnp.sum(u * u, axis=-1, keepdims=True)       # reduce (relu breaks carry)
                h, h2 = _projx_carry(*_exp0_carry(u, u2))

                # ---- logmap0 -> LayerNorm (two-pass variance) -> expmap0 ----
                u = h * _log0_scale(h2)
                inv_d = 1.0 / float(d_out)                        # true (unpadded) width
                mean = jnp.sum(u, axis=-1, keepdims=True) * inv_d  # reduce
                uc = u - mean
                if valid is not None:
                    uc = uc * valid            # keep padded lanes exactly zero
                var = jnp.sum(uc * uc, axis=-1, keepdims=True) * inv_d  # reduce
                v = uc * jax.lax.rsqrt(var + LN_EPS) * g + be
                v2 = jnp.sum(v * v, axis=-1, keepdims=True)       # reduce (affine breaks carry)
                h, h2 = _projx_carry(*_exp0_carry(v, v2))

            x, x2 = h, h2

        o_ref[...] = x.astype(o_ref.dtype)

    return kernel


# ------------------------------ host-side prep -------------------------------
def _expmap0_host(u):
    un = jnp.maximum(jnp.linalg.norm(u, axis=-1, keepdims=True), MIN_NORM)
    return jnp.tanh(SQRT_C * un) * u / (SQRT_C * un)


def _pad2d(x, rows, cols):
    r, c = x.shape
    return jnp.pad(x, ((0, rows - r), (0, cols - c)))


def prepare_hyp_seq_linear(params, ft_in):
    """One-time parameter preprocessing (run at model load, NOT per forward):
    transpose + lane-pad weights, cast them to bf16 for the MXU, hoist
    expmap0(bias) / ||expmap0(bias)||^2, fold the bias inner product into a
    spare matmul lane, and zero-pad LayerNorm affine params."""
    n_layers = len(params)
    layer_meta = []
    ops = []
    b2_list = []
    k_prev = ft_in                        # contraction width seen by the kernel
    for idx, p in enumerate(params):
        is_last = idx == n_layers - 1
        w = jnp.asarray(p["w"], jnp.float32)              # (d_out, d_prev)
        b = jnp.asarray(p["b"], jnp.float32)
        d_out = w.shape[0]
        dpo = _round_up(d_out, LANE)
        has_spare = dpo > d_out

        bias_h = _expmap0_host(b.reshape(1, d_out))       # hoisted expmap0(bias)
        b2_list.append(jnp.sum(bias_h * bias_h))
        bias_h_p = _pad2d(bias_h, 1, dpo)

        # K dim is NOT zero-padded for the first layer (d_in stays as-is);
        # later layers contract over the previous layer's padded width.
        w_t = _pad2d(w.T, k_prev, dpo)                    # (k_prev, dpo) f32
        if has_spare:
            # <W x, expmap0(b)> == x @ (W^T expmap0(b)) -> ride a spare lane.
            col = w_t @ bias_h_p[0]
            w_t = w_t.at[:, dpo - 1].set(col)
        ops.append(w_t.astype(jnp.bfloat16))              # bf16 MXU operand
        ops.append(bias_h_p)
        if not is_last:
            ops.append(_pad2d(jnp.asarray(p["gamma"], jnp.float32).reshape(1, d_out), 1, dpo))
            ops.append(_pad2d(jnp.asarray(p["beta"], jnp.float32).reshape(1, d_out), 1, dpo))

        layer_meta.append((d_out, dpo, not is_last, has_spare))
        k_prev = dpo

    return {
        "ops": tuple(ops),
        "b2": jnp.stack(b2_list).astype(jnp.float32),     # SMEM scalar prefetch
        "layer_meta": tuple(layer_meta),
        "ft_in": ft_in,
    }


def _vmem_limit_bytes(tm, d_in, layer_meta, ops):
    max_w = max(dpo for _, dpo, _, _ in layer_meta)
    dpo_last = layer_meta[-1][1]
    est = 2 * tm * d_in * 4                                         # in tile x2
    est += 2 * tm * dpo_last * 4                                    # out tile x2
    est += 2 * sum(int(o.size) * o.dtype.itemsize for o in ops)     # params x2
    est += 12 * tm * max_w * 4                                      # live f32 temps
    return int(min(64 * 1024 * 1024, max(est, 8 * 1024 * 1024)))


# ------------------------------ forward --------------------------------------
def hyp_seq_linear(x, prepped, *, max_tm=512):
    """x: (N, ft_in) points on the Poincaré ball; prepped from
    prepare_hyp_seq_linear (weights already transposed/padded/bf16-cast)."""
    layer_meta = prepped["layer_meta"]
    ops = prepped["ops"]
    n, d_in = x.shape
    assert d_in == prepped["ft_in"]
    d_last, dpo_last, _, _ = layer_meta[-1]

    # Row tiling: one tile per <=max_tm rows.  The grid is a serial loop on
    # single-TC v5e/v6e; on v7x a split only appears once each tile already has
    # >=max_tm (>=128) rows of real work.  max_tm=512 amortizes the ~600-cycle
    # per-grid-step overhead (consider 1024 on v5e/v6e).
    n8 = _round_up(max(n, SUBLANE), SUBLANE)
    tm = min(max_tm, n8)
    n_pad = _round_up(n8, tm)
    grid = (n_pad // tm,)

    x_p = jnp.pad(jnp.asarray(x, jnp.float32), ((0, n_pad - n), (0, 0)))

    in_specs = [pl.BlockSpec((tm, d_in), lambda i, *_: (i, 0))]
    # Grid-invariant parameters (constant index_map -> DMA'd once).
    # TODO(synk): on v7x with multi-thousand-wide layers, single-buffer these
    # with pipeline_mode=pl.Buffered(1) to halve their VMEM footprint;
    # irrelevant at the d<=128 shipped config.
    for op in ops:
        in_specs.append(pl.BlockSpec(op.shape, lambda i, *_: (0, 0)))

    out = pl.pallas_call(
        _make_fused_kernel(layer_meta),
        out_shape=jax.ShapeDtypeStruct((n_pad, dpo_last), jnp.float32),
        grid_spec=pltpu.PrefetchScalarGridSpec(
            num_scalar_prefetch=1,            # per-layer b2 scalars -> SMEM
            grid=grid,
            in_specs=in_specs,
            out_specs=pl.BlockSpec((tm, dpo_last), lambda i, *_: (i, 0))),
        compiler_params=pltpu.CompilerParams(
            dimension_semantics=("parallel",),
            vmem_limit_bytes=_vmem_limit_bytes(tm, d_in, layer_meta, ops)),
    )(prepped["b2"], x_p, *ops)

    return out[:n, :d_last].astype(x.dtype)


# ------------------------------ main ----------------------------------------
if __name__ == "__main__":
    key = jax.random.PRNGKey(0)

    # Module config: ft_in=32, layer_dims=[32, 16]
    batch, ft_in = 16, 32
    layer_dims = (32, 16)

    keys = jax.random.split(key, 2 * len(layer_dims) + 1)
    params = []
    d_prev = ft_in
    for i, d_out in enumerate(layer_dims):
        bound = 1.0 / float(d_prev) ** 0.5            # nn.Linear-style uniform init
        w = jax.random.uniform(keys[2 * i], (d_out, d_prev),
                               minval=-bound, maxval=bound, dtype=jnp.float32)
        b = jax.random.uniform(keys[2 * i + 1], (d_out,),
                               minval=-bound, maxval=bound, dtype=jnp.float32)
        p = {"w": w, "b": b}
        if i != len(layer_dims) - 1:
            p["gamma"] = jnp.ones((d_out,), jnp.float32)   # LayerNorm weight
            p["beta"] = jnp.zeros((d_out,), jnp.float32)   # LayerNorm bias
        params.append(p)
        d_prev = d_out

    # One-time weight preprocessing (model load).
    prepped = prepare_hyp_seq_linear(params, ft_in)

    # Input: Euclidean noise mapped onto the Poincaré ball via expmap0 (glue).
    u = 0.1 * jax.random.normal(keys[-1], (batch, ft_in), dtype=jnp.float32)
    un = jnp.maximum(jnp.linalg.norm(u, axis=-1, keepdims=True), MIN_NORM)
    x = jnp.tanh(un) * u / un

    out = hyp_seq_linear(x, prepped)
    out = jax.block_until_ready(out)

    assert out.shape == (batch, layer_dims[-1])
    assert bool(jnp.all(jnp.isfinite(out)))
    # points must stay strictly inside the ball, with margin (projx radius is
    # 1 - BALL_EPS; leave slack for carried-norm rounding drift).
    assert bool(jnp.all(jnp.linalg.norm(out, axis=-1) < 1.0 - 0.5 * BALL_EPS))
    print("KERNEL_OK")
</pallas_src>

<mosaic_0001>
module attributes {stable_mosaic.version = 11 : i64} {
  func.func @kernel(%arg0: i32, %arg1: memref<2xf32, #tpu.memory_space<smem>>, %arg2: memref<16x32xf32, #tpu.memory_space<vmem>>, %arg3: memref<32x128xbf16, #tpu.memory_space<vmem>>, %arg4: memref<1x128xf32, #tpu.memory_space<vmem>>, %arg5: memref<1x128xf32, #tpu.memory_space<vmem>>, %arg6: memref<1x128xf32, #tpu.memory_space<vmem>>, %arg7: memref<128x128xbf16, #tpu.memory_space<vmem>>, %arg8: memref<1x128xf32, #tpu.memory_space<vmem>>, %arg9: memref<16x128xf32, #tpu.memory_space<vmem>>) attributes {dimension_semantics = [#tpu.dimension_semantics<parallel>], iteration_bounds = array<i64: 1>, scalar_prefetch = 1 : i64, scratch_operands = 0 : i64, tpu.core_type = #tpu.core_type<tc>, window_params = [{transform_indices = @transform_0, window_bounds = array<i64: 16, 32>}, {pipeline_mode = #tpu.pipeline_mode<synchronous>, transform_indices = @transform_1, window_bounds = array<i64: 32, 128>}, {pipeline_mode = #tpu.pipeline_mode<synchronous>, transform_indices = @transform_2, window_bounds = array<i64: 1, 128>}, {pipeline_mode = #tpu.pipeline_mode<synchronous>, transform_indices = @transform_3, window_bounds = array<i64: 1, 128>}, {pipeline_mode = #tpu.pipeline_mode<synchronous>, transform_indices = @transform_4, window_bounds = array<i64: 1, 128>}, {pipeline_mode = #tpu.pipeline_mode<synchronous>, transform_indices = @transform_5, window_bounds = array<i64: 128, 128>}, {pipeline_mode = #tpu.pipeline_mode<synchronous>, transform_indices = @transform_6, window_bounds = array<i64: 1, 128>}, {transform_indices = @transform_7, window_bounds = array<i64: 16, 128>}]} {
    %c0 = arith.constant 0 : index
    %c0_0 = arith.constant 0 : index
    %0 = vector.load %arg2[%c0, %c0_0] : memref<16x32xf32, #tpu.memory_space<vmem>>, vector<16x32xf32>
    %1 = arith.mulf %0, %0 : vector<16x32xf32>
    %cst = arith.constant dense<0.000000e+00> : vector<16xf32>
    %2 = vector.multi_reduction <add>, %1, %cst [1] : vector<16x32xf32> to vector<16xf32>
    %3 = vector.shape_cast %2 : vector<16xf32> to vector<16x1xf32>
    %c0_1 = arith.constant 0 : index
    %c0_2 = arith.constant 0 : index
    %4 = vector.load %arg3[%c0_1, %c0_2] : memref<32x128xbf16, #tpu.memory_space<vmem>>, vector<32x128xbf16>
    %c0_3 = arith.constant 0 : index
    %c0_4 = arith.constant 0 : index
    %5 = vector.load %arg4[%c0_3, %c0_4] : memref<1x128xf32, #tpu.memory_space<vmem>>, vector<1x128xf32>
    %c0_5 = arith.constant 0 : index
    %c0_6 = arith.constant 0 : index
    %6 = vector.load %arg5[%c0_5, %c0_6] : memref<1x128xf32, #tpu.memory_space<vmem>>, vector<1x128xf32>
    %c0_7 = arith.constant 0 : index
    %c0_8 = arith.constant 0 : index
    %7 = vector.load %arg6[%c0_7, %c0_8] : memref<1x128xf32, #tpu.memory_space<vmem>>, vector<1x128xf32>
    %c0_9 = arith.constant 0 : index
    %8 = memref.load %arg1[%c0_9] : memref<2xf32, #tpu.memory_space<smem>>
    %9 = tpu.iota {dimensions = array<i32: 1>} : vector<1x128xi32>
    %c32_i32 = arith.constant 32 : i32
    %10 = vector.broadcast %c32_i32 : i32 to vector<1x128xi32>
    %11 = arith.cmpi slt, %9, %10 : vector<1x128xi32>
    %12 = arith.extui %11 : vector<1x128xi1> to vector<1x128xi32>
    %13 = arith.sitofp %12 : vector<1x128xi32> to vector<1x128xf32>
    %14 = math.sqrt %3 : vector<16x1xf32>
    %cst_10 = arith.constant 9.99999974E-6 : f32
    %15 = vector.broadcast %cst_10 : f32 to vector<16x1xf32>
    %16 = arith.maximumf %14, %15 : vector<16x1xf32>
    %17 = arith.truncf %0 : vector<16x32xf32> to vector<16x32xbf16>
    %cst_11 = arith.constant dense<0.000000e+00> : vector<16x128xf32>
    %18 = tpu.matmul %17, %4, %cst_11 {dimension_numbers = #tpu.dot_dimension_numbers<[1], [0], [0], [1], [0, 0, 1, 1], [], []>} : vector<16x32xbf16>, vector<32x128xbf16>, vector<16x128xf32> -> vector<16x128xf32>
    %19 = vector.extract_strided_slice %18 {offsets = [0, 127], sizes = [16, 1], strides = [1, 1]} : vector<16x128xf32> to vector<16x1xf32>
    %20 = vector.broadcast %13 : vector<1x128xf32> to vector<16x128xf32>
    %21 = arith.mulf %18, %20 : vector<16x128xf32>
    %22 = arith.mulf %21, %21 : vector<16x128xf32>
    %cst_12 = arith.constant dense<0.000000e+00> : vector<16xf32>
    %23 = vector.multi_reduction <add>, %22, %cst_12 [1] : vector<16x128xf32> to vector<16xf32>
    %24 = vector.shape_cast %23 : vector<16xf32> to vector<16x1xf32>
    %25 = math.sqrt %24 : vector<16x1xf32>
    %cst_13 = arith.constant 9.99999974E-6 : f32
    %26 = vector.broadcast %cst_13 : f32 to vector<16x1xf32>
    %27 = arith.maximumf %25, %26 : vector<16x1xf32>
    %28 = tpu.reciprocal %16 {approx = true} : vector<16x1xf32> -> vector<16x1xf32>
    %29 = arith.mulf %27, %28 : vector<16x1xf32>
    %cst_14 = arith.constant 1.000000e+00 : f32
    %30 = vector.broadcast %cst_14 : f32 to vector<16x1xf32>
    %31 = arith.mulf %30, %16 : vector<16x1xf32>
    %cst_15 = arith.constant -0.99999988 : f32
    %cst_16 = arith.constant 0.99999988 : f32
    %32 = vector.broadcast %cst_15 : f32 to vector<16x1xf32>
    %33 = arith.maximumf %32, %31 : vector<16x1xf32>
    %34 = vector.broadcast %cst_16 : f32 to vector<16x1xf32>
    %35 = arith.minimumf %34, %33 : vector<16x1xf32>
    %cst_17 = arith.constant 1.000000e+00 : f32
    %36 = vector.broadcast %cst_17 : f32 to vector<16x1xf32>
    %37 = arith.addf %36, %35 : vector<16x1xf32>
    %cst_18 = arith.constant 1.000000e+00 : f32
    %38 = vector.broadcast %cst_18 : f32 to vector<16x1xf32>
    %39 = arith.subf %38, %35 : vector<16x1xf32>
    %40 = tpu.reciprocal %39 {approx = true} : vector<16x1xf32> -> vector<16x1xf32>
    %41 = arith.mulf %39, %40 : vector<16x1xf32>
    %cst_19 = arith.constant 2.000000e+00 : f32
    %42 = vector.broadcast %cst_19 : f32 to vector<16x1xf32>
    %43 = arith.subf %42, %41 : vector<16x1xf32>
    %44 = arith.mulf %40, %43 : vector<16x1xf32>
    %45 = arith.mulf %37, %44 : vector<16x1xf32>
    %46 = math.log %45 : vector<16x1xf32>
    %cst_20 = arith.constant 5.000000e-01 : f32
    %47 = vector.broadcast %cst_20 : f32 to vector<16x1xf32>
    %48 = arith.mulf %47, %46 : vector<16x1xf32>
    %49 = arith.mulf %29, %48 : vector<16x1xf32>
    %50 = math.tanh %49 : vector<16x1xf32>
    %cst_21 = arith.constant 1.000000e+00 : f32
    %51 = vector.broadcast %cst_21 : f32 to vector<16x1xf32>
    %52 = arith.mulf %51, %27 : vector<16x1xf32>
    %53 = tpu.reciprocal %52 {approx = true} : vector<16x1xf32> -> vector<16x1xf32>
    %54 = arith.mulf %50, %53 : vector<16x1xf32>
    %cst_22 = arith.constant 0.000000e+00 : f32
    %55 = vector.broadcast %cst_22 : f32 to vector<16x1xf32>
    %56 = arith.cmpf oeq, %24, %55 : vector<16x1xf32>
    %cst_23 = arith.constant 0.000000e+00 : f32
    %57 = vector.broadcast %cst_23 : f32 to vector<16x1xf32>
    %58 = arith.select %56, %57, %54 : vector<16x1xi1>, vector<16x1xf32>
    %59 = vector.broadcast %58 : vector<16x1xf32> to vector<16x128xf32>
    %60 = arith.mulf %59, %21 : vector<16x128xf32>
    %61 = arith.mulf %58, %58 : vector<16x1xf32>
    %62 = arith.mulf %61, %24 : vector<16x1xf32>
    %63 = arith.mulf %58, %19 : vector<16x1xf32>
    %cst_24 = arith.constant 2.000000e+00 : f32
    %64 = vector.broadcast %cst_24 : f32 to vector<16x1xf32>
    %65 = arith.mulf %64, %63 : vector<16x1xf32>
    %cst_25 = arith.constant 1.000000e+00 : f32
    %66 = vector.broadcast %cst_25 : f32 to vector<16x1xf32>
    %67 = arith.addf %66, %65 : vector<16x1xf32>
    %cst_26 = arith.constant 1.000000e+00 : f32
    %68 = arith.mulf %cst_26, %8 : f32
    %69 = vector.broadcast %68 : f32 to vector<16x1xf32>
    %70 = arith.addf %67, %69 : vector<16x1xf32>
    %cst_27 = arith.constant 1.000000e+00 : f32
    %71 = vector.broadcast %cst_27 : f32 to vector<16x1xf32>
    %72 = arith.mulf %71, %62 : vector<16x1xf32>
    %cst_28 = arith.constant 1.000000e+00 : f32
    %73 = vector.broadcast %cst_28 : f32 to vector<16x1xf32>
    %74 = arith.subf %73, %72 : vector<16x1xf32>
    %cst_29 = arith.constant 2.000000e+00 : f32
    %75 = vector.broadcast %cst_29 : f32 to vector<16x1xf32>
    %76 = arith.mulf %75, %63 : vector<16x1xf32>
    %cst_30 = arith.constant 1.000000e+00 : f32
    %77 = vector.broadcast %cst_30 : f32 to vector<16x1xf32>
    %78 = arith.addf %77, %76 : vector<16x1xf32>
    %cst_31 = arith.constant 1.000000e+00 : f32
    %79 = vector.broadcast %cst_31 : f32 to vector<16x1xf32>
    %80 = arith.mulf %79, %62 : vector<16x1xf32>
    %81 = vector.broadcast %8 : f32 to vector<16x1xf32>
    %82 = arith.mulf %80, %81 : vector<16x1xf32>
    %83 = arith.addf %78, %82 : vector<16x1xf32>
    %cst_32 = arith.constant 9.99999974E-6 : f32
    %84 = vector.broadcast %cst_32 : f32 to vector<16x1xf32>
    %85 = arith.maximumf %83, %84 : vector<16x1xf32>
    %86 = tpu.reciprocal %85 {approx = true} : vector<16x1xf32> -> vector<16x1xf32>
    %87 = arith.mulf %85, %86 : vector<16x1xf32>
    %cst_33 = arith.constant 2.000000e+00 : f32
    %88 = vector.broadcast %cst_33 : f32 to vector<16x1xf32>
    %89 = arith.subf %88, %87 : vector<16x1xf32>
    %90 = arith.mulf %86, %89 : vector<16x1xf32>
    %91 = vector.broadcast %70 : vector<16x1xf32> to vector<16x128xf32>
    %92 = arith.mulf %91, %60 : vector<16x128xf32>
    %93 = vector.broadcast %74 : vector<16x1xf32> to vector<16x128xf32>
    %94 = vector.broadcast %5 : vector<1x128xf32> to vector<16x128xf32>
    %95 = arith.mulf %93, %94 : vector<16x128xf32>
    %96 = arith.addf %92, %95 : vector<16x128xf32>
    %97 = vector.broadcast %90 : vector<16x1xf32> to vector<16x128xf32>
    %98 = arith.mulf %96, %97 : vector<16x128xf32>
    %99 = arith.mulf %70, %70 : vector<16x1xf32>
    %100 = arith.mulf %99, %62 : vector<16x1xf32>
    %cst_34 = arith.constant 2.000000e+00 : f32
    %101 = vector.broadcast %cst_34 : f32 to vector<16x1xf32>
    %102 = arith.mulf %101, %70 : vector<16x1xf32>
    %103 = arith.mulf %102, %74 : vector<16x1xf32>
    %104 = arith.mulf %103, %63 : vector<16x1xf32>
    %105 = arith.addf %100, %104 : vector<16x1xf32>
    %106 = arith.mulf %74, %74 : vector<16x1xf32>
    %107 = vector.broadcast %8 : f32 to vector<16x1xf32>
    %108 = arith.mulf %106, %107 : vector<16x1xf32>
    %109 = arith.addf %105, %108 : vector<16x1xf32>
    %110 = arith.mulf %90, %90 : vector<16x1xf32>
    %111 = arith.mulf %109, %110 : vector<16x1xf32>
    %cst_35 = arith.constant 0.000000e+00 : f32
    %112 = vector.broadcast %cst_35 : f32 to vector<16x1xf32>
    %113 = arith.maximumf %111, %112 : vector<16x1xf32>
    %114 = math.sqrt %113 : vector<16x1xf32>
    %cst_36 = arith.constant 9.99999974E-6 : f32
    %115 = vector.broadcast %cst_36 : f32 to vector<16x1xf32>
    %116 = arith.maximumf %114, %115 : vector<16x1xf32>
    %cst_37 = arith.constant 0.995999991 : f32
    %117 = vector.broadcast %cst_37 : f32 to vector<16x1xf32>
    %118 = arith.cmpf ogt, %116, %117 : vector<16x1xf32>
    %119 = tpu.reciprocal %116 {approx = true} : vector<16x1xf32> -> vector<16x1xf32>
    %cst_38 = arith.constant 0.995999991 : f32
    %120 = vector.broadcast %cst_38 : f32 to vector<16x1xf32>
    %121 = arith.mulf %120, %119 : vector<16x1xf32>
    %cst_39 = arith.constant 1.000000e+00 : f32
    %122 = vector.broadcast %cst_39 : f32 to vector<16x1xf32>
    %123 = arith.select %118, %121, %122 : vector<16x1xi1>, vector<16x1xf32>
    %124 = vector.broadcast %123 : vector<16x1xf32> to vector<16x128xf32>
    %125 = arith.mulf %98, %124 : vector<16x128xf32>
    %126 = arith.mulf %123, %123 : vector<16x1xf32>
    %127 = arith.mulf %113, %126 : vector<16x1xf32>
    %128 = math.sqrt %127 : vector<16x1xf32>
    %cst_40 = arith.constant 9.99999974E-6 : f32
    %129 = vector.broadcast %cst_40 : f32 to vector<16x1xf32>
    %130 = arith.maximumf %128, %129 : vector<16x1xf32>
    %cst_41 = arith.constant 1.000000e+00 : f32
    %131 = vector.broadcast %cst_41 : f32 to vector<16x1xf32>
    %132 = arith.mulf %131, %130 : vector<16x1xf32>
    %cst_42 = arith.constant -0.99999988 : f32
    %cst_43 = arith.constant 0.99999988 : f32
    %133 = vector.broadcast %cst_42 : f32 to vector<16x1xf32>
    %134 = arith.maximumf %133, %132 : vector<16x1xf32>
    %135 = vector.broadcast %cst_43 : f32 to vector<16x1xf32>
    %136 = arith.minimumf %135, %134 : vector<16x1xf32>
    %cst_44 = arith.constant 1.000000e+00 : f32
    %137 = vector.broadcast %cst_44 : f32 to vector<16x1xf32>
    %138 = arith.addf %137, %136 : vector<16x1xf32>
    %cst_45 = arith.constant 1.000000e+00 : f32
    %139 = vector.broadcast %cst_45 : f32 to vector<16x1xf32>
    %140 = arith.subf %139, %136 : vector<16x1xf32>
    %141 = tpu.reciprocal %140 {approx = true} : vector<16x1xf32> -> vector<16x1xf32>
    %142 = arith.mulf %140, %141 : vector<16x1xf32>
    %cst_46 = arith.constant 2.000000e+00 : f32
    %143 = vector.broadcast %cst_46 : f32 to vector<16x1xf32>
    %144 = arith.subf %143, %142 : vector<16x1xf32>
    %145 = arith.mulf %141, %144 : vector<16x1xf32>
    %146 = arith.mulf %138, %145 : vector<16x1xf32>
    %147 = math.log %146 : vector<16x1xf32>
    %cst_47 = arith.constant 5.000000e-01 : f32
    %148 = vector.broadcast %cst_47 : f32 to vector<16x1xf32>
    %149 = arith.mulf %148, %147 : vector<16x1xf32>
    %cst_48 = arith.constant 1.000000e+00 : f32
    %150 = vector.broadcast %cst_48 : f32 to vector<16x1xf32>
    %151 = arith.mulf %150, %130 : vector<16x1xf32>
    %152 = tpu.reciprocal %151 {approx = true} : vector<16x1xf32> -> vector<16x1xf32>
    %153 = arith.mulf %149, %152 : vector<16x1xf32>
    %154 = vector.broadcast %153 : vector<16x1xf32> to vector<16x128xf32>
    %155 = arith.mulf %125, %154 : vector<16x128xf32>
    %cst_49 = arith.constant 0.000000e+00 : f32
    %156 = vector.broadcast %cst_49 : f32 to vector<16x128xf32>
    %157 = arith.maximumf %155, %156 : vector<16x128xf32>
    %158 = arith.mulf %157, %157 : vector<16x128xf32>
    %cst_50 = arith.constant dense<0.000000e+00> : vector<16xf32>
    %159 = vector.multi_reduction <add>, %158, %cst_50 [1] : vector<16x128xf32> to vector<16xf32>
    %160 = vector.shape_cast %159 : vector<16xf32> to vector<16x1xf32>
    %161 = math.sqrt %160 : vector<16x1xf32>
    %cst_51 = arith.constant 9.99999974E-6 : f32
    %162 = vector.broadcast %cst_51 : f32 to vector<16x1xf32>
    %163 = arith.maximumf %161, %162 : vector<16x1xf32>
    %cst_52 = arith.constant 1.000000e+00 : f32
    %164 = vector.broadcast %cst_52 : f32 to vector<16x1xf32>
    %165 = arith.mulf %164, %163 : vector<16x1xf32>
    %166 = math.tanh %165 : vector<16x1xf32>
    %cst_53 = arith.constant 1.000000e+00 : f32
    %167 = vector.broadcast %cst_53 : f32 to vector<16x1xf32>
    %168 = arith.mulf %167, %163 : vector<16x1xf32>
    %169 = tpu.reciprocal %168 {approx = true} : vector<16x1xf32> -> vector<16x1xf32>
    %170 = arith.mulf %166, %169 : vector<16x1xf32>
    %171 = vector.broadcast %170 : vector<16x1xf32> to vector<16x128xf32>
    %172 = arith.mulf %157, %171 : vector<16x128xf32>
    %173 = arith.mulf %170, %170 : vector<16x1xf32>
    %174 = arith.mulf %160, %173 : vector<16x1xf32>
    %175 = math.sqrt %174 : vector<16x1xf32>
    %cst_54 = arith.constant 9.99999974E-6 : f32
    %176 = vector.broadcast %cst_54 : f32 to vector<16x1xf32>
    %177 = arith.maximumf %175, %176 : vector<16x1xf32>
    %cst_55 = arith.constant 0.995999991 : f32
    %178 = vector.broadcast %cst_55 : f32 to vector<16x1xf32>
    %179 = arith.cmpf ogt, %177, %178 : vector<16x1xf32>
    %180 = tpu.reciprocal %177 {approx = true} : vector<16x1xf32> -> vector<16x1xf32>
    %cst_56 = arith.constant 0.995999991 : f32
    %181 = vector.broadcast %cst_56 : f32 to vector<16x1xf32>
    %182 = arith.mulf %181, %180 : vector<16x1xf32>
    %cst_57 = arith.constant 1.000000e+00 : f32
    %183 = vector.broadcast %cst_57 : f32 to vector<16x1xf32>
    %184 = arith.select %179, %182, %183 : vector<16x1xi1>, vector<16x1xf32>
    %185 = vector.broadcast %184 : vector<16x1xf32> to vector<16x128xf32>
    %186 = arith.mulf %172, %185 : vector<16x128xf32>
    %187 = arith.mulf %184, %184 : vector<16x1xf32>
    %188 = arith.mulf %174, %187 : vector<16x1xf32>
    %189 = math.sqrt %188 : vector<16x1xf32>
    %cst_58 = arith.constant 9.99999974E-6 : f32
    %190 = vector.broadcast %cst_58 : f32 to vector<16x1xf32>
    %191 = arith.maximumf %189, %190 : vector<16x1xf32>
    %cst_59 = arith.constant 1.000000e+00 : f32
    %192 = vector.broadcast %cst_59 : f32 to vector<16x1xf32>
    %193 = arith.mulf %192, %191 : vector<16x1xf32>
    %cst_60 = arith.constant -0.99999988 : f32
    %cst_61 = arith.constant 0.99999988 : f32
    %194 = vector.broadcast %cst_60 : f32 to vector<16x1xf32>
    %195 = arith.maximumf %194, %193 : vector<16x1xf32>
    %196 = vector.broadcast %cst_61 : f32 to vector<16x1xf32>
    %197 = arith.minimumf %196, %195 : vector<16x1xf32>
    %cst_62 = arith.constant 1.000000e+00 : f32
    %198 = vector.broadcast %cst_62 : f32 to vector<16x1xf32>
    %199 = arith.addf %198, %197 : vector<16x1xf32>
    %cst_63 = arith.constant 1.000000e+00 : f32
    %200 = vector.broadcast %cst_63 : f32 to vector<16x1xf32>
    %201 = arith.subf %200, %197 : vector<16x1xf32>
    %202 = tpu.reciprocal %201 {approx = true} : vector<16x1xf32> -> vector<16x1xf32>
    %203 = arith.mulf %201, %202 : vector<16x1xf32>
    %cst_64 = arith.constant 2.000000e+00 : f32
    %204 = vector.broadcast %cst_64 : f32 to vector<16x1xf32>
    %205 = arith.subf %204, %203 : vector<16x1xf32>
    %206 = arith.mulf %202, %205 : vector<16x1xf32>
    %207 = arith.mulf %199, %206 : vector<16x1xf32>
    %208 = math.log %207 : vector<16x1xf32>
    %cst_65 = arith.constant 5.000000e-01 : f32
    %209 = vector.broadcast %cst_65 : f32 to vector<16x1xf32>
    %210 = arith.mulf %209, %208 : vector<16x1xf32>
    %cst_66 = arith.constant 1.000000e+00 : f32
    %211 = vector.broadcast %cst_66 : f32 to vector<16x1xf32>
    %212 = arith.mulf %211, %191 : vector<16x1xf32>
    %213 = tpu.reciprocal %212 {approx = true} : vector<16x1xf32> -> vector<16x1xf32>
    %214 = arith.mulf %210, %213 : vector<16x1xf32>
    %215 = vector.broadcast %214 : vector<16x1xf32> to vector<16x128xf32>
    %216 = arith.mulf %186, %215 : vector<16x128xf32>
    %cst_67 = arith.constant dense<0.000000e+00> : vector<16xf32>
    %217 = vector.multi_reduction <add>, %216, %cst_67 [1] : vector<16x128xf32> to vector<16xf32>
    %218 = vector.shape_cast %217 : vector<16xf32> to vector<16x1xf32>
    %cst_68 = arith.constant 3.125000e-02 : f32
    %219 = vector.broadcast %cst_68 : f32 to vector<16x1xf32>
    %220 = arith.mulf %218, %219 : vector<16x1xf32>
    %221 = vector.broadcast %220 : vector<16x1xf32> to vector<16x128xf32>
    %222 = arith.subf %216, %221 : vector<16x128xf32>
    %223 = vector.broadcast %13 : vector<1x128xf32> to vector<16x128xf32>
    %224 = arith.mulf %222, %223 : vector<16x128xf32>
    %225 = arith.mulf %224, %224 : vector<16x128xf32>
    %cst_69 = arith.constant dense<0.000000e+00> : vector<16xf32>
    %226 = vector.multi_reduction <add>, %225, %cst_69 [1] : vector<16x128xf32> to vector<16xf32>
    %227 = vector.shape_cast %226 : vector<16xf32> to vector<16x1xf32>
    %cst_70 = arith.constant 3.125000e-02 : f32
    %228 = vector.broadcast %cst_70 : f32 to vector<16x1xf32>
    %229 = arith.mulf %227, %228 : vector<16x1xf32>
    %cst_71 = arith.constant 9.99999974E-6 : f32
    %230 = vector.broadcast %cst_71 : f32 to vector<16x1xf32>
    %231 = arith.addf %229, %230 : vector<16x1xf32>
    %232 = math.rsqrt %231 : vector<16x1xf32>
    %233 = vector.broadcast %232 : vector<16x1xf32> to vector<16x128xf32>
    %234 = arith.mulf %224, %233 : vector<16x128xf32>
    %235 = vector.broadcast %6 : vector<1x128xf32> to vector<16x128xf32>
    %236 = arith.mulf %234, %235 : vector<16x128xf32>
    %237 = vector.broadcast %7 : vector<1x128xf32> to vector<16x128xf32>
    %238 = arith.addf %236, %237 : vector<16x128xf32>
    %239 = arith.mulf %238, %238 : vector<16x128xf32>
    %cst_72 = arith.constant dense<0.000000e+00> : vector<16xf32>
    %240 = vector.multi_reduction <add>, %239, %cst_72 [1] : vector<16x128xf32> to vector<16xf32>
    %241 = vector.shape_cast %240 : vector<16xf32> to vector<16x1xf32>
    %242 = math.sqrt %241 : vector<16x1xf32>
    %cst_73 = arith.constant 9.99999974E-6 : f32
    %243 = vector.broadcast %cst_73 : f32 to vector<16x1xf32>
    %244 = arith.maximumf %242, %243 : vector<16x1xf32>
    %cst_74 = arith.constant 1.000000e+00 : f32
    %245 = vector.broadcast %cst_74 : f32 to vector<16x1xf32>
    %246 = arith.mulf %245, %244 : vector<16x1xf32>
    %247 = math.tanh %246 : vector<16x1xf32>
    %cst_75 = arith.constant 1.000000e+00 : f32
    %248 = vector.broadcast %cst_75 : f32 to vector<16x1xf32>
    %249 = arith.mulf %248, %244 : vector<16x1xf32>
    %250 = tpu.reciprocal %249 {approx = true} : vector<16x1xf32> -> vector<16x1xf32>
    %251 = arith.mulf %247, %250 : vector<16x1xf32>
    %252 = vector.broadcast %251 : vector<16x1xf32> to vector<16x128xf32>
    %253 = arith.mulf %238, %252 : vector<16x128xf32>
    %254 = arith.mulf %251, %251 : vector<16x1xf32>
    %255 = arith.mulf %241, %254 : vector<16x1xf32>
    %256 = math.sqrt %255 : vector<16x1xf32>
    %cst_76 = arith.constant 9.99999974E-6 : f32
    %257 = vector.broadcast %cst_76 : f32 to vector<16x1xf32>
    %258 = arith.maximumf %256, %257 : vector<16x1xf32>
    %cst_77 = arith.constant 0.995999991 : f32
    %259 = vector.broadcast %cst_77 : f32 to vector<16x1xf32>
    %260 = arith.cmpf ogt, %258, %259 : vector<16x1xf32>
    %261 = tpu.reciprocal %258 {approx = true} : vector<16x1xf32> -> vector<16x1xf32>
    %cst_78 = arith.constant 0.995999991 : f32
    %262 = vector.broadcast %cst_78 : f32 to vector<16x1xf32>
    %263 = arith.mulf %262, %261 : vector<16x1xf32>
    %cst_79 = arith.constant 1.000000e+00 : f32
    %264 = vector.broadcast %cst_79 : f32 to vector<16x1xf32>
    %265 = arith.select %260, %263, %264 : vector<16x1xi1>, vector<16x1xf32>
    %266 = vector.broadcast %265 : vector<16x1xf32> to vector<16x128xf32>
    %267 = arith.mulf %253, %266 : vector<16x128xf32>
    %268 = arith.mulf %265, %265 : vector<16x1xf32>
    %269 = arith.mulf %255, %268 : vector<16x1xf32>
    %c0_80 = arith.constant 0 : index
    %c0_81 = arith.constant 0 : index
    %270 = vector.load %arg7[%c0_80, %c0_81] : memref<128x128xbf16, #tpu.memory_space<vmem>>, vector<128x128xbf16>
    %c0_82 = arith.constant 0 : index
    %c0_83 = arith.constant 0 : index
    %271 = vector.load %arg8[%c0_82, %c0_83] : memref<1x128xf32, #tpu.memory_space<vmem>>, vector<1x128xf32>
    %c1 = arith.constant 1 : index
    %272 = memref.load %arg1[%c1] : memref<2xf32, #tpu.memory_space<smem>>
    %273 = tpu.iota {dimensions = array<i32: 1>} : vector<1x128xi32>
    %c16_i32 = arith.constant 16 : i32
    %274 = vector.broadcast %c16_i32 : i32 to vector<1x128xi32>
    %275 = arith.cmpi slt, %273, %274 : vector<1x128xi32>
    %276 = arith.extui %275 : vector<1x128xi1> to vector<1x128xi32>
    %277 = arith.sitofp %276 : vector<1x128xi32> to vector<1x128xf32>
    %278 = math.sqrt %269 : vector<16x1xf32>
    %cst_84 = arith.constant 9.99999974E-6 : f32
    %279 = vector.broadcast %cst_84 : f32 to vector<16x1xf32>
    %280 = arith.maximumf %278, %279 : vector<16x1xf32>
    %281 = arith.truncf %267 : vector<16x128xf32> to vector<16x128xbf16>
    %cst_85 = arith.constant dense<0.000000e+00> : vector<16x128xf32>
    %282 = tpu.matmul %281, %270, %cst_85 {dimension_numbers = #tpu.dot_dimension_numbers<[1], [0], [0], [1], [0, 0, 1, 1], [], []>} : vector<16x128xbf16>, vector<128x128xbf16>, vector<16x128xf32> -> vector<16x128xf32>
    %283 = vector.extract_strided_slice %282 {offsets = [0, 127], sizes = [16, 1], strides = [1, 1]} : vector<16x128xf32> to vector<16x1xf32>
    %284 = vector.broadcast %277 : vector<1x128xf32> to vector<16x128xf32>
    %285 = arith.mulf %282, %284 : vector<16x128xf32>
    %286 = arith.mulf %285, %285 : vector<16x128xf32>
    %cst_86 = arith.constant dense<0.000000e+00> : vector<16xf32>
    %287 = vector.multi_reduction <add>, %286, %cst_86 [1] : vector<16x128xf32> to vector<16xf32>
    %288 = vector.shape_cast %287 : vector<16xf32> to vector<16x1xf32>
    %289 = math.sqrt %288 : vector<16x1xf32>
    %cst_87 = arith.constant 9.99999974E-6 : f32
    %290 = vector.broadcast %cst_87 : f32 to vector<16x1xf32>
    %291 = arith.maximumf %289, %290 : vector<16x1xf32>
    %292 = tpu.reciprocal %280 {approx = true} : vector<16x1xf32> -> vector<16x1xf32>
    %293 = arith.mulf %291, %292 : vector<16x1xf32>
    %cst_88 = arith.constant 1.000000e+00 : f32
    %294 = vector.broadcast %cst_88 : f32 to vector<16x1xf32>
    %295 = arith.mulf %294, %280 : vector<16x1xf32>
    %cst_89 = arith.constant -0.99999988 : f32
    %cst_90 = arith.constant 0.99999988 : f32
    %296 = vector.broadcast %cst_89 : f32 to vector<16x1xf32>
    %297 = arith.maximumf %296, %295 : vector<16x1xf32>
    %298 = vector.broadcast %cst_90 : f32 to vector<16x1xf32>
    %299 = arith.minimumf %298, %297 : vector<16x1xf32>
    %cst_91 = arith.constant 1.000000e+00 : f32
    %300 = vector.broadcast %cst_91 : f32 to vector<16x1xf32>
    %301 = arith.addf %300, %299 : vector<16x1xf32>
    %cst_92 = arith.constant 1.000000e+00 : f32
    %302 = vector.broadcast %cst_92 : f32 to vector<16x1xf32>
    %303 = arith.subf %302, %299 : vector<16x1xf32>
    %304 = tpu.reciprocal %303 {approx = true} : vector<16x1xf32> -> vector<16x1xf32>
    %305 = arith.mulf %303, %304 : vector<16x1xf32>
    %cst_93 = arith.constant 2.000000e+00 : f32
    %306 = vector.broadcast %cst_93 : f32 to vector<16x1xf32>
    %307 = arith.subf %306, %305 : vector<16x1xf32>
    %308 = arith.mulf %304, %307 : vector<16x1xf32>
    %309 = arith.mulf %301, %308 : vector<16x1xf32>
    %310 = math.log %309 : vector<16x1xf32>
    %cst_94 = arith.constant 5.000000e-01 : f32
    %311 = vector.broadcast %cst_94 : f32 to vector<16x1xf32>
    %312 = arith.mulf %311, %310 : vector<16x1xf32>
    %313 = arith.mulf %293, %312 : vector<16x1xf32>
    %314 = math.tanh %313 : vector<16x1xf32>
    %cst_95 = arith.constant 1.000000e+00 : f32
    %315 = vector.broadcast %cst_95 : f32 to vector<16x1xf32>
    %316 = arith.mulf %315, %291 : vector<16x1xf32>
    %317 = tpu.reciprocal %316 {approx = true} : vector<16x1xf32> -> vector<16x1xf32>
    %318 = arith.mulf %314, %317 : vector<16x1xf32>
    %cst_96 = arith.constant 0.000000e+00 : f32
    %319 = vector.broadcast %cst_96 : f32 to vector<16x1xf32>
    %320 = arith.cmpf oeq, %288, %319 : vector<16x1xf32>
    %cst_97 = arith.constant 0.000000e+00 : f32
    %321 = vector.broadcast %cst_97 : f32 to vector<16x1xf32>
    %322 = arith.select %320, %321, %318 : vector<16x1xi1>, vector<16x1xf32>
    %323 = vector.broadcast %322 : vector<16x1xf32> to vector<16x128xf32>
    %324 = arith.mulf %323, %285 : vector<16x128xf32>
    %325 = arith.mulf %322, %322 : vector<16x1xf32>
    %326 = arith.mulf %325, %288 : vector<16x1xf32>
    %327 = arith.mulf %322, %283 : vector<16x1xf32>
    %cst_98 = arith.constant 2.000000e+00 : f32
    %328 = vector.broadcast %cst_98 : f32 to vector<16x1xf32>
    %329 = arith.mulf %328, %327 : vector<16x1xf32>
    %cst_99 = arith.constant 1.000000e+00 : f32
    %330 = vector.broadcast %cst_99 : f32 to vector<16x1xf32>
    %331 = arith.addf %330, %329 : vector<16x1xf32>
    %cst_100 = arith.constant 1.000000e+00 : f32
    %332 = arith.mulf %cst_100, %272 : f32
    %333 = vector.broadcast %332 : f32 to vector<16x1xf32>
    %334 = arith.addf %331, %333 : vector<16x1xf32>
    %cst_101 = arith.constant 1.000000e+00 : f32
    %335 = vector.broadcast %cst_101 : f32 to vector<16x1xf32>
    %336 = arith.mulf %335, %326 : vector<16x1xf32>
    %cst_102 = arith.constant 1.000000e+00 : f32
    %337 = vector.broadcast %cst_102 : f32 to vector<16x1xf32>
    %338 = arith.subf %337, %336 : vector<16x1xf32>
    %cst_103 = arith.constant 2.000000e+00 : f32
    %339 = vector.broadcast %cst_103 : f32 to vector<16x1xf32>
    %340 = arith.mulf %339, %327 : vector<16x1xf32>
    %cst_104 = arith.constant 1.000000e+00 : f32
    %341 = vector.broadcast %cst_104 : f32 to vector<16x1xf32>
    %342 = arith.addf %341, %340 : vector<16x1xf32>
    %cst_105 = arith.constant 1.000000e+00 : f32
    %343 = vector.broadcast %cst_105 : f32 to vector<16x1xf32>
    %344 = arith.mulf %343, %326 : vector<16x1xf32>
    %345 = vector.broadcast %272 : f32 to vector<16x1xf32>
    %346 = arith.mulf %344, %345 : vector<16x1xf32>
    %347 = arith.addf %342, %346 : vector<16x1xf32>
    %cst_106 = arith.constant 9.99999974E-6 : f32
    %348 = vector.broadcast %cst_106 : f32 to vector<16x1xf32>
    %349 = arith.maximumf %347, %348 : vector<16x1xf32>
    %350 = tpu.reciprocal %349 {approx = true} : vector<16x1xf32> -> vector<16x1xf32>
    %351 = arith.mulf %349, %350 : vector<16x1xf32>
    %cst_107 = arith.constant 2.000000e+00 : f32
    %352 = vector.broadcast %cst_107 : f32 to vector<16x1xf32>
    %353 = arith.subf %352, %351 : vector<16x1xf32>
    %354 = arith.mulf %350, %353 : vector<16x1xf32>
    %355 = vector.broadcast %334 : vector<16x1xf32> to vector<16x128xf32>
    %356 = arith.mulf %355, %324 : vector<16x128xf32>
    %357 = vector.broadcast %338 : vector<16x1xf32> to vector<16x128xf32>
    %358 = vector.broadcast %271 : vector<1x128xf32> to vector<16x128xf32>
    %359 = arith.mulf %357, %358 : vector<16x128xf32>
    %360 = arith.addf %356, %359 : vector<16x128xf32>
    %361 = vector.broadcast %354 : vector<16x1xf32> to vector<16x128xf32>
    %362 = arith.mulf %360, %361 : vector<16x128xf32>
    %363 = arith.mulf %334, %334 : vector<16x1xf32>
    %364 = arith.mulf %363, %326 : vector<16x1xf32>
    %cst_108 = arith.constant 2.000000e+00 : f32
    %365 = vector.broadcast %cst_108 : f32 to vector<16x1xf32>
    %366 = arith.mulf %365, %334 : vector<16x1xf32>
    %367 = arith.mulf %366, %338 : vector<16x1xf32>
    %368 = arith.mulf %367, %327 : vector<16x1xf32>
    %369 = arith.addf %364, %368 : vector<16x1xf32>
    %370 = arith.mulf %338, %338 : vector<16x1xf32>
    %371 = vector.broadcast %272 : f32 to vector<16x1xf32>
    %372 = arith.mulf %370, %371 : vector<16x1xf32>
    %373 = arith.addf %369, %372 : vector<16x1xf32>
    %374 = arith.mulf %354, %354 : vector<16x1xf32>
    %375 = arith.mulf %373, %374 : vector<16x1xf32>
    %cst_109 = arith.constant 0.000000e+00 : f32
    %376 = vector.broadcast %cst_109 : f32 to vector<16x1xf32>
    %377 = arith.maximumf %375, %376 : vector<16x1xf32>
    %378 = math.sqrt %377 : vector<16x1xf32>
    %cst_110 = arith.constant 9.99999974E-6 : f32
    %379 = vector.broadcast %cst_110 : f32 to vector<16x1xf32>
    %380 = arith.maximumf %378, %379 : vector<16x1xf32>
    %cst_111 = arith.constant 0.995999991 : f32
    %381 = vector.broadcast %cst_111 : f32 to vector<16x1xf32>
    %382 = arith.cmpf ogt, %380, %381 : vector<16x1xf32>
    %383 = tpu.reciprocal %380 {approx = true} : vector<16x1xf32> -> vector<16x1xf32>
    %cst_112 = arith.constant 0.995999991 : f32
    %384 = vector.broadcast %cst_112 : f32 to vector<16x1xf32>
    %385 = arith.mulf %384, %383 : vector<16x1xf32>
    %cst_113 = arith.constant 1.000000e+00 : f32
    %386 = vector.broadcast %cst_113 : f32 to vector<16x1xf32>
    %387 = arith.select %382, %385, %386 : vector<16x1xi1>, vector<16x1xf32>
    %388 = vector.broadcast %387 : vector<16x1xf32> to vector<16x128xf32>
    %389 = arith.mulf %362, %388 : vector<16x128xf32>
    %c0_114 = arith.constant 0 : index
    %c0_115 = arith.constant 0 : index
    %390 = vector.load %arg9[%c0_114, %c0_115] : memref<16x128xf32, #tpu.memory_space<vmem>>, vector<16x128xf32>
    tpu.vector_store %arg9[%c0_114, %c0_115], %389 {strides = array<i32>} : memref<16x128xf32, #tpu.memory_space<vmem>>, vector<16x128xf32>,
    return
  }
  func.func @transform_0(%arg0: i32, %arg1: memref<2xf32, #tpu.memory_space<smem>>) -> (i32, i32) {
    %c0_i32 = arith.constant 0 : i32
    %c0_i32_0 = arith.constant 0 : i32
    return %arg0, %c0_i32 : i32, i32
  }
  func.func @transform_1(%arg0: i32, %arg1: memref<2xf32, #tpu.memory_space<smem>>) -> (i32, i32) {
    %c0_i32 = arith.constant 0 : i32
    %c0_i32_0 = arith.constant 0 : i32
    %c0_i32_1 = arith.constant 0 : i32
    return %c0_i32, %c0_i32_0 : i32, i32
  }
  func.func @transform_2(%arg0: i32, %arg1: memref<2xf32, #tpu.memory_space<smem>>) -> (i32, i32) {
    %c0_i32 = arith.constant 0 : i32
    %c0_i32_0 = arith.constant 0 : i32
    %c0_i32_1 = arith.constant 0 : i32
    return %c0_i32, %c0_i32_0 : i32, i32
  }
  func.func @transform_3(%arg0: i32, %arg1: memref<2xf32, #tpu.memory_space<smem>>) -> (i32, i32) {
    %c0_i32 = arith.constant 0 : i32
    %c0_i32_0 = arith.constant 0 : i32
    %c0_i32_1 = arith.constant 0 : i32
    return %c0_i32, %c0_i32_0 : i32, i32
  }
  func.func @transform_4(%arg0: i32, %arg1: memref<2xf32, #tpu.memory_space<smem>>) -> (i32, i32) {
    %c0_i32 = arith.constant 0 : i32
    %c0_i32_0 = arith.constant 0 : i32
    %c0_i32_1 = arith.constant 0 : i32
    return %c0_i32, %c0_i32_0 : i32, i32
  }
  func.func @transform_5(%arg0: i32, %arg1: memref<2xf32, #tpu.memory_space<smem>>) -> (i32, i32) {
    %c0_i32 = arith.constant 0 : i32
    %c0_i32_0 = arith.constant 0 : i32
    %c0_i32_1 = arith.constant 0 : i32
    return %c0_i32, %c0_i32_0 : i32, i32
  }
  func.func @transform_6(%arg0: i32, %arg1: memref<2xf32, #tpu.memory_space<smem>>) -> (i32, i32) {
    %c0_i32 = arith.constant 0 : i32
    %c0_i32_0 = arith.constant 0 : i32
    %c0_i32_1 = arith.constant 0 : i32
    return %c0_i32, %c0_i32_0 : i32, i32
  }
  func.func @transform_7(%arg0: i32, %arg1: memref<2xf32, #tpu.memory_space<smem>>) -> (i32, i32) {
    %c0_i32 = arith.constant 0 : i32
    %c0_i32_0 = arith.constant 0 : i32
    return %arg0, %c0_i32 : i32, i32
  }
}

</mosaic_0001>

<llo_original>
// kernel: tpu_custom_call.1
$region0: #{tpu_custom_call.1}
  #allocation0 [shape = 'u32[]', space=smem, size = 0x4, offset = 0x4, fixed_abs, tag = 'smem constant byte address 0x4 - core index']
  #allocation1 [shape = 'u32[144,128]{1,0:T(1,128)}', space=vmem, size = 0x12000, scoped, tag = 'internal scratch']
  #allocation2 [shape = 's32[1]{0}', space=sflag, size = 0x4, scoped, tag = 'scoped memory for tpu_custom_call.1']
  #allocation3 [shape = 'u8[512]{0}', space=smem, size = 0x200, scoped, tag = 'prefetched SMEM operand 0']
  %s0 = inlined_call_operand.hbm [shape: f32[2], index: 0, kind: input, shape index: {}]
  %s1 = inlined_call_operand.hbm [shape: f32[16,32], index: 1, kind: input, shape index: {}]
  %s2 = inlined_call_operand.hbm [shape: bf16[32,128], index: 2, kind: input, shape index: {}]
  %s3 = inlined_call_operand.vmem [shape: f32[1,128], index: 3, kind: input, shape index: {}]
  %s4 = inlined_call_operand.vmem [shape: f32[1,128], index: 4, kind: input, shape index: {}]
  %s5 = inlined_call_operand.vmem [shape: f32[1,128], index: 5, kind: input, shape index: {}]
  %s6 = inlined_call_operand.hbm [shape: bf16[128,128], index: 6, kind: input, shape index: {}]
  %s7 = inlined_call_operand.vmem [shape: f32[1,128], index: 7, kind: input, shape index: {}]
  %s8 = inlined_call_operand.hbm [shape: f32[16,128], index: 8, kind: output, shape index: {}]
  %s9 = sld [smem:[#allocation0]]
  $region50: #{tpu_custom_call.1} parent=0
    _
  %s11 = ssub.s32 1, %s9
  %s12 = scalar_select 0, %s11, %s9
  %14 = dma.hbm_to_smem %s0, 16, [#allocation3], [#allocation2]
  %15 = dma.done [#allocation2], 16
  %16 = sfence
  $region1: #{tpu_custom_call.1} parent=0
    #allocation4 [shape = 'u8[8192]{0}', space=vmem, size = 0x2000, scoped, tag = 'input window, operand 1, single buffered']
    #allocation5 [shape = 's32[1]{0}', space=sflag, size = 0x4, scoped, tag = 'scoped memory for tpu_custom_call.1']
    #allocation6 [shape = 's32[1]{0}', space=sflag, size = 0x4, scoped, tag = 'scoped memory for tpu_custom_call.1']
    #allocation7 [shape = 'u8[8192]{0}', space=vmem, size = 0x2000, scoped, tag = 'input window, operand 2, single buffered']
    #allocation8 [shape = 's32[1]{0}', space=sflag, size = 0x4, scoped, tag = 'scoped memory for tpu_custom_call.1']
    #allocation9 [shape = 'u8[32768]{0}', space=vmem, size = 0x8000, scoped, tag = 'input window, operand 6, single buffered']
    #allocation10 [shape = 'u8[8192]{0}', space=vmem, size = 0x2000, scoped, tag = 'output window, operand 0, single buffered']
    %17 = vsyncpa [#allocation5], 0
    %18 = vsyncpa [#allocation8], 0
    %19 = vsyncpa [#allocation6], 0
    // Predicated region
    $region2: #{tpu_custom_call.1} parent=1 // pred_check
      _
    $region3: #{tpu_custom_call.1} parent=1 // pred_check_branch
      %21 = sbr.rel (0) target = $region5
    $region4: #{tpu_custom_call.1} parent=1 // pred_region
      %s23 = ssub.s32 256, 256
      %24 = vsyncadd [#allocation5], %s23
      %s25 = sshll.u32 [#allocation4], 4
      %s26 = int_to_ptr.vmem [resolvable:$true] %s25
      %31 = dma.hbm_to_vmem [thread:$0]  %s1, 256, %s26, [#allocation5], 128, 128, 8
    $region5: #{tpu_custom_call.1} parent=1 // pred_fallthru
      _
    // Predicated region
    $region6: #{tpu_custom_call.1} parent=1 // pred_check
      _
    $region7: #{tpu_custom_call.1} parent=1 // pred_check_branch
      %33 = sbr.rel (0) target = $region9
    $region8: #{tpu_custom_call.1} parent=1 // pred_region
      %s35 = ssub.s32 256, 256
      %36 = vsyncadd [#allocation8], %s35
      %s37 = sshll.u32 [#allocation7], 4
      %s38 = int_to_ptr.vmem [resolvable:$true] %s37
      %43 = dma.hbm_to_vmem [thread:$0]  %s2, 256, %s38, [#allocation8], 64, 64, 4
    $region9: #{tpu_custom_call.1} parent=1 // pred_fallthru
      _
    // Predicated region
    $region10: #{tpu_custom_call.1} parent=1 // pred_check
      _
    $region11: #{tpu_custom_call.1} parent=1 // pred_check_branch
      %45 = sbr.rel (0) target = $region13
    $region12: #{tpu_custom_call.1} parent=1 // pred_region
      _
    $region13: #{tpu_custom_call.1} parent=1 // pred_fallthru
      _
    // Predicated region
    $region14: #{tpu_custom_call.1} parent=1 // pred_check
      _
    $region15: #{tpu_custom_call.1} parent=1 // pred_check_branch
      %47 = sbr.rel (0) target = $region17
    $region16: #{tpu_custom_call.1} parent=1 // pred_region
      _
    $region17: #{tpu_custom_call.1} parent=1 // pred_fallthru
      _
    // Predicated region
    $region18: #{tpu_custom_call.1} parent=1 // pred_check
      _
    $region19: #{tpu_custom_call.1} parent=1 // pred_check_branch
      %49 = sbr.rel (0) target = $region21
    $region20: #{tpu_custom_call.1} parent=1 // pred_region
      _
    $region21: #{tpu_custom_call.1} parent=1 // pred_fallthru
      _
    // Predicated region
    $region22: #{tpu_custom_call.1} parent=1 // pred_check
      _
    $region23: #{tpu_custom_call.1} parent=1 // pred_check_branch
      %51 = sbr.rel (0) target = $region25
    $region24: #{tpu_custom_call.1} parent=1 // pred_region
      %s53 = ssub.s32 1024, 1024
      %54 = vsyncadd [#allocation8], %s53
      %s55 = sshll.u32 [#allocation9], 4
      %s56 = int_to_ptr.vmem [resolvable:$true] %s55
      %61 = dma.hbm_to_vmem [thread:$0]  %s6, 1024, %s56, [#allocation8], 64, 64, 4
    $region25: #{tpu_custom_call.1} parent=1 // pred_fallthru
      _
    // Predicated region
    $region26: #{tpu_custom_call.1} parent=1 // pred_check
      _
    $region27: #{tpu_custom_call.1} parent=1 // pred_check_branch
      %63 = sbr.rel (0) target = $region29
    $region28: #{tpu_custom_call.1} parent=1 // pred_region
      _
    $region29: #{tpu_custom_call.1} parent=1 // pred_fallthru
      _
    // Predicated region
    $region30: #{tpu_custom_call.1} parent=1 // pred_check
      _
    $region31: #{tpu_custom_call.1} parent=1 // pred_check_branch
      %65 = sbr.rel (0) target = $region33
    $region32: #{tpu_custom_call.1} parent=1 // pred_region
      %66 = dma.done [#allocation5], 256
    $region33: #{tpu_custom_call.1} parent=1 // pred_fallthru
      _
    // Predicated region
    $region34: #{tpu_custom_call.1} parent=1 // pred_check
      _
    $region35: #{tpu_custom_call.1} parent=1 // pred_check_branch
      %68 = sbr.rel (0) target = $region37
    $region36: #{tpu_custom_call.1} parent=1 // pred_region
      %69 = dma.done [#allocation8], 256
    $region37: #{tpu_custom_call.1} parent=1 // pred_fallthru
      _
    // Predicated region
    $region38: #{tpu_custom_call.1} parent=1 // pred_check
      _
    $region39: #{tpu_custom_call.1} parent=1 // pred_check_branch
      %71 = sbr.rel (0) target = $region41
    $region40: #{tpu_custom_call.1} parent=1 // pred_region
      %72 = dma.done [#allocation8], 1024
    $region41: #{tpu_custom_call.1} parent=1 // pred_fallthru
      _
    %v74 = vld [vmem:[#allocation4] sm:$0xff]
    %v75 = vld [vmem:[#allocation4 + $0x8] sm:$0xff]
    %v76 = vmul.f32 %v74, %v74
    %v77 = vmul.f32 %v75, %v75
    %vm78 = vcmask 261120
    %v79 = vsel %vm78, %v76, 0.0
    %80 = vadd.xlane.f32.xlu0 %v79
    %v81 = vpop.xlane.xlu0 %80
    %v82 = vsel %vm78, %v77, 0.0
    %83 = vadd.xlane.f32.xlu0 %v82
    %v84 = vpop.xlane.xlu0 %83
    %v85 = vld [vmem:[#allocation7] sm:$0xf]
    %v86 = vld [vmem:[#allocation7 + $0x4] sm:$0xf]
    %v87 = vld [vmem:[#allocation7 + $0x8] sm:$0xf]
    %v88 = vld [vmem:[#allocation7 + $0xc] sm:$0xf]
    %v89 = vld [vmem:[%s3] sm:$0x1]
    %v90 = vld [vmem:[%s4] sm:$0x1]
    %v91 = vld [vmem:[%s5] sm:$0x1]
    %s92 = sld [smem:[#allocation3]]
    %v93 = vlaneseq
    %v94 = vand.u32 %v93, 127
    %vm95 = vcmp.lt.s32.totalorder %v94, 32
    %v96 = vsel %vm95, 1, 0
    %v97 = vcvt.s32.f32 %v96
    %v98 = vrsqrt.pop %v81
    %v99 = vmul.f32 %v81, %v98
    %vm100 = vcmp.eq.f32.partialorder %v81, inf
    %v101 = vsel %vm100, %v81, %v99
    %vm102 = vcmp.eq.f32.partialorder %v81, 0.0
    %v103 = vand.u32 %v81, 2147483648
    %v104 = vsel %vm102, %v103, %v101
    %v105 = vrsqrt.pop %v84
    %v106 = vmul.f32 %v84, %v105
    %vm107 = vcmp.eq.f32.partialorder %v84, inf
    %v108 = vsel %vm107, %v84, %v106
    %vm109 = vcmp.eq.f32.partialorder %v84, 0.0
    %v110 = vand.u32 %v84, 2147483648
    %v111 = vsel %vm109, %v110, %v108
    %v112 = vmax.f32 %v104, 1e-05
    %v113 = vmax.f32 %v111, 1e-05
    %v114 = vpack.c.bf16 %v75, %v74
    %v119 = vunpack.c.l.b16 %v85
    %v120 = vunpack.c.l.b16 %v86
    %v121 = vunpack.c.l.b16 %v87
    %v122 = vunpack.c.l.b16 %v88
    %v123 = vpack.c.b16 %v120, %v119
    %v124 = vpack.c.b16 %v122, %v121
    %v128 = vsel %vm78, %v114, 0
    %130 = vmatprep.subr.bf16.mxu0 0
    %131 = vmatpush1.bf16.msra.mxu0 %v123
    %132 = vmatprep.subr.bf16.mxu0 0
    %133 = vmatpush1.bf16.msra.mxu0 %v124
    %134 = vmatprep.subr.bf16.mxu0 0
    %135 = vmatpush1.bf16.msra.mxu0 0
    %136 = vmatprep.subr.bf16.mxu0 0
    %137 = vmatpush1.bf16.msra.mxu0 0
    %138 = vmatprep.subr.bf16.mxu0 0
    %139 = vmatpush1.bf16.msra.mxu0 0
    %140 = vmatprep.subr.bf16.mxu0 0
    %141 = vmatpush1.bf16.msra.mxu0 0
    %142 = vmatprep.subr.bf16.mxu0 0
    %143 = vmatpush1.bf16.msra.mxu0 0
    %144 = vmatprep.subr.bf16.mxu0 0
    %145 = vmatpush1.bf16.msra.mxu0 0
    %146 = vmatprep.subr.bf16.mxu0 0
    %147 = vmatpush1.bf16.msra.mxu0 0
    %148 = vmatprep.subr.bf16.mxu0 0
    %149 = vmatpush1.bf16.msra.mxu0 0
    %150 = vmatprep.subr.bf16.mxu0 0
    %151 = vmatpush1.bf16.msra.mxu0 0
    %152 = vmatprep.subr.bf16.mxu0 0
    %153 = vmatpush1.bf16.msra.mxu0 0
    %154 = vmatprep.subr.bf16.mxu0 0
    %155 = vmatpush1.bf16.msra.mxu0 0
    %156 = vmatprep.subr.bf16.mxu0 0
    %157 = vmatpush1.bf16.msra.mxu0 0
    %158 = vmatprep.subr.bf16.mxu0 0
    %159 = vmatpush1.bf16.msra.mxu0 0
    %160 = vmatprep.subr.bf16.mxu0 0
    %161 = vmatpush1.bf16.msra.mxu0 0
    %162 = vmatprep.mubr.bf16.mxu0 0
    %163 = vmatmul.mubr.bf16.gmra.mrb[0].mxu0 %v128
    %v164 = vpop.f32.mrb[0].mxu0
    %v165 = vadd.f32 0.0, %v164
    %v166 = vpop.f32.mrb[0].mxu0
    %v167 = vpop.f32.mrb[0].mxu0
    %v168 = vadd.f32 0.0, %v167
    %v169 = vpop.f32.mrb[0].mxu0
    %170 = vdwg.mxu0
    %v171 = vmul.f32 %v165, %v97
    %v172 = vmul.f32 %v168, %v97
    %v173 = vmul.f32 %v171, %v171
    %v174 = vmul.f32 %v172, %v172
    %175 = vadd.xlane.f32.xlu0 %v173
    %v176 = vpop.xlane.xlu0 %175
    %177 = vadd.xlane.f32.xlu0 %v174
    %v178 = vpop.xlane.xlu0 %177
    %v179 = vrsqrt.pop %v176
    %v180 = vmul.f32 %v176, %v179
    %vm181 = vcmp.eq.f32.partialorder %v176, inf
    %v182 = vsel %vm181, %v176, %v180
    %vm183 = vcmp.eq.f32.partialorder %v176, 0.0
    %v184 = vand.u32 %v176, 2147483648
    %v185 = vsel %vm183, %v184, %v182
    %v186 = vrsqrt.pop %v178
    %v187 = vmul.f32 %v178, %v186
    %vm188 = vcmp.eq.f32.partialorder %v178, inf
    %v189 = vsel %vm188, %v178, %v187
    %vm190 = vcmp.eq.f32.partialorder %v178, 0.0
    %v191 = vand.u32 %v178, 2147483648
    %v192 = vsel %vm190, %v191, %v189
    %v193 = vmax.f32 %v185, 1e-05
    %v194 = vmax.f32 %v192, 1e-05
    %v195 = vrcp.pop %v112
    %v196 = vrcp.pop %v113
    %v197 = vmul.f32 %v193, %v195
    %v198 = vmul.f32 %v194, %v196
    %v199 = vmax.f32 %v112, -0.9999999
    %v200 = vmax.f32 %v113, -0.9999999
    %v201 = vmin.f32 %v199, 0.9999999
    %v202 = vmin.f32 %v200, 0.9999999
    %v203 = vadd.f32 %v201, 1.0
    %v204 = vadd.f32 %v202, 1.0
    %v205 = vsub.f32 1.0, %v201
    %v206 = vsub.f32 1.0, %v202
    %v207 = vrcp.pop %v205
    %v208 = vrcp.pop %v206
    %v209 = vmul.f32 %v205, %v207
    %v210 = vmul.f32 %v206, %v208
    %v211 = vsub.f32 2.0, %v209
    %v212 = vsub.f32 2.0, %v210
    %v213 = vmul.f32 %v207, %v211
    %v214 = vmul.f32 %v208, %v212
    %v215 = vmul.f32 %v203, %v213
    %v216 = vmul.f32 %v204, %v214
    %v217 = vlog2.pop %v215
    %v218 = vmul.f32 %v217, 0.6931472
    %v219 = vlog2.pop %v216
    %v220 = vmul.f32 %v219, 0.6931472
    %v221 = vmul.f32 %v218, 0.5
    %v222 = vmul.f32 %v220, 0.5
    %v223 = vmul.f32 %v197, %v221
    %v224 = vmul.f32 %v198, %v222
    %v225 = vtanh.pop %v223
    %v226 = vtanh.pop %v224
    %v227 = vrcp.pop %v193
    %v228 = vrcp.pop %v194
    %v229 = vmul.f32 %v225, %v227
    %v230 = vmul.f32 %v226, %v228
    %vm231 = vcmp.eq.f32.partialorder %v176, 0.0
    %vm232 = vcmp.eq.f32.partialorder %v178, 0.0
    %v233 = vsel %vm231, 0.0, %v229
    %v234 = vsel %vm232, 0.0, %v230
    %v235 = vmul.f32 %v233, %v171
    %v236 = vmul.f32 %v234, %v172
    %v237 = vmul.f32 %v233, %v233
    %v238 = vmul.f32 %v234, %v234
    %v239 = vmul.f32 %v237, %v176
    %v240 = vmul.f32 %v238, %v178
    %v241 = vmul.f32 %v233, %v165
    %v242 = vmul.f32 %v234, %v168
    %v243 = vmul.f32 %v241, 2.0
    %v244 = vmul.f32 %v242, 2.0
    %v245 = vadd.f32 %v243, 1.0
    %v246 = vadd.f32 %v244, 1.0
    %v247 = vstv %s92
    %v248 = vadd.f32 %v245, %v247
    %v249 = vadd.f32 %v246, %v247
    %v250 = vsub.f32 1.0, %v239
    %v251 = vsub.f32 1.0, %v240
    %v252 = vmul.f32 %v239, %v247
    %v253 = vmul.f32 %v240, %v247
    %v254 = vadd.f32 %v245, %v252
    %v255 = vadd.f32 %v246, %v253
    %v256 = vmax.f32 %v254, 1e-05
    %v257 = vmax.f32 %v255, 1e-05
    %v258 = vrcp.pop %v256
    %v259 = vrcp.pop %v257
    %v260 = vmul.f32 %v256, %v258
    %v261 = vmul.f32 %v257, %v259
    %v262 = vsub.f32 2.0, %v260
    %v263 = vsub.f32 2.0, %v261
    %v264 = vmul.f32 %v258, %v262
    %v265 = vmul.f32 %v259, %v263
    %267 = vset.pattern.permute.xlu0 127
    %268 = vperm.xlu0 %267, %v248
    %v269 = vpop.permute.xlu0 %268
    %272 = vset.pattern.permute.xlu0 127
    %273 = vperm.xlu0 %272, %v249
    %v274 = vpop.permute.xlu0 %273
    %v276 = vmul.f32 %v269, %v235
    %v277 = vmul.f32 %v274, %v236
    %v279 = vlaneseq
    %v280 = vshrl.u32 %v279, 7
    %v281 = vsub.s32 0, %v280
    %v282 = vrot.slane %v89, %v281
    %v284 = vmul.f32 %v250, %v282
    %v285 = vmul.f32 %v251, %v282
    %v286 = vadd.f32 %v276, %v284
    %v287 = vadd.f32 %v277, %v285
    %289 = vset.pattern.permute.xlu0 127
    %290 = vperm.xlu0 %289, %v264
    %v291 = vpop.permute.xlu0 %290
    %294 = vset.pattern.permute.xlu0 127
    %295 = vperm.xlu0 %294, %v265
    %v296 = vpop.permute.xlu0 %295
    %v298 = vmul.f32 %v286, %v291
    %v299 = vmul.f32 %v287, %v296
    %v300 = vmul.f32 %v248, %v248
    %v301 = vmul.f32 %v249, %v249
    %v302 = vmul.f32 %v300, %v239
    %v303 = vmul.f32 %v301, %v240
    %v304 = vmul.f32 %v248, 2.0
    %v305 = vmul.f32 %v249, 2.0
    %v306 = vmul.f32 %v304, %v250
    %v307 = vmul.f32 %v305, %v251
    %v308 = vmul.f32 %v306, %v241
    %v309 = vmul.f32 %v307, %v242
    %v310 = vadd.f32 %v302, %v308
    %v311 = vadd.f32 %v303, %v309
    %v312 = vmul.f32 %v250, %v250
    %v313 = vmul.f32 %v251, %v251
    %v314 = vmul.f32 %v312, %v247
    %v315 = vmul.f32 %v313, %v247
    %v316 = vadd.f32 %v310, %v314
    %v317 = vadd.f32 %v311, %v315
    %v318 = vmul.f32 %v264, %v264
    %v319 = vmul.f32 %v265, %v265
    %v320 = vmul.f32 %v316, %v318
    %v321 = vmul.f32 %v317, %v319
    %v322 = vmax.f32 %v320, 0.0
    %v323 = vmax.f32 %v321, 0.0
    %v324 = vrsqrt.pop %v322
    %v325 = vmul.f32 %v322, %v324
    %vm326 = vcmp.eq.f32.partialorder %v322, inf
    %v327 = vsel %vm326, %v322, %v325
    %vm328 = vcmp.eq.f32.partialorder %v322, 0.0
    %v329 = vand.u32 %v322, 2147483648
    %v330 = vsel %vm328, %v329, %v327
    %v331 = vrsqrt.pop %v323
    %v332 = vmul.f32 %v323, %v331
    %vm333 = vcmp.eq.f32.partialorder %v323, inf
    %v334 = vsel %vm333, %v323, %v332
    %vm335 = vcmp.eq.f32.partialorder %v323, 0.0
    %v336 = vand.u32 %v323, 2147483648
    %v337 = vsel %vm335, %v336, %v334
    %v338 = vmax.f32 %v330, 1e-05
    %v339 = vmax.f32 %v337, 1e-05
    %vm340 = vcmp.gt.f32.partialorder %v338, 0.996
    %vm341 = vcmp.gt.f32.partialorder %v339, 0.996
    %v342 = vrcp.pop %v338
    %v343 = vrcp.pop %v339
    %v344 = vmul.f32 %v342, 0.996
    %v345 = vmul.f32 %v343, 0.996
    %v346 = vsel %vm340, %v344, 1.0
    %v347 = vsel %vm341, %v345, 1.0
    %349 = vset.pattern.permute.xlu0 127
    %350 = vperm.xlu0 %349, %v346
    %v351 = vpop.permute.xlu0 %350
    %354 = vset.pattern.permute.xlu0 127
    %355 = vperm.xlu0 %354, %v347
    %v356 = vpop.permute.xlu0 %355
    %v358 = vmul.f32 %v298, %v351
    %v359 = vmul.f32 %v299, %v356
    %v360 = vmul.f32 %v346, %v346
    %v361 = vmul.f32 %v347, %v347
    %v362 = vmul.f32 %v322, %v360
    %v363 = vmul.f32 %v323, %v361
    %v364 = vrsqrt.pop %v362
    %v365 = vmul.f32 %v362, %v364
    %vm366 = vcmp.eq.f32.partialorder %v362, inf
    %v367 = vsel %vm366, %v362, %v365
    %vm368 = vcmp.eq.f32.partialorder %v362, 0.0
    %v369 = vand.u32 %v362, 2147483648
    %v370 = vsel %vm368, %v369, %v367
    %v371 = vrsqrt.pop %v363
    %v372 = vmul.f32 %v363, %v371
    %vm373 = vcmp.eq.f32.partialorder %v363, inf
    %v374 = vsel %vm373, %v363, %v372
    %vm375 = vcmp.eq.f32.partialorder %v363, 0.0
    %v376 = vand.u32 %v363, 2147483648
    %v377 = vsel %vm375, %v376, %v374
    %v378 = vmax.f32 %v370, 1e-05
    %v379 = vmax.f32 %v377, 1e-05
    %v380 = vmax.f32 %v378, -0.9999999
    %v381 = vmax.f32 %v379, -0.9999999
    %v382 = vmin.f32 %v380, 0.9999999
    %v383 = vmin.f32 %v381, 0.9999999
    %v384 = vadd.f32 %v382, 1.0
    %v385 = vadd.f32 %v383, 1.0
    %v386 = vsub.f32 1.0, %v382
    %v387 = vsub.f32 1.0, %v383
    %v388 = vrcp.pop %v386
    %v389 = vrcp.pop %v387
    %v390 = vmul.f32 %v386, %v388
    %v391 = vmul.f32 %v387, %v389
    %v392 = vsub.f32 2.0, %v390
    %v393 = vsub.f32 2.0, %v391
    %v394 = vmul.f32 %v388, %v392
    %v395 = vmul.f32 %v389, %v393
    %v396 = vmul.f32 %v384, %v394
    %v397 = vmul.f32 %v385, %v395
    %v398 = vlog2.pop %v396
    %v399 = vmul.f32 %v398, 0.6931472
    %v400 = vlog2.pop %v397
    %v401 = vmul.f32 %v400, 0.6931472
    %v402 = vmul.f32 %v399, 0.5
    %v403 = vmul.f32 %v401, 0.5
    %v404 = vrcp.pop %v378
    %v405 = vrcp.pop %v379
    %v406 = vmul.f32 %v402, %v404
    %v407 = vmul.f32 %v403, %v405
    %409 = vset.pattern.permute.xlu0 127
    %410 = vperm.xlu0 %409, %v406
    %v411 = vpop.permute.xlu0 %410
    %414 = vset.pattern.permute.xlu0 127
    %415 = vperm.xlu0 %414, %v407
    %v416 = vpop.permute.xlu0 %415
    %v418 = vmul.f32 %v358, %v411
    %v419 = vmul.f32 %v359, %v416
    %v420 = vmax.f32 %v418, 0.0
    %v421 = vmax.f32 %v419, 0.0
    %v422 = vmul.f32 %v420, %v420
    %v423 = vmul.f32 %v421, %v421
    %424 = vadd.xlane.f32.xlu0 %v422
    %v425 = vpop.xlane.xlu0 %424
    %426 = vadd.xlane.f32.xlu0 %v423
    %v427 = vpop.xlane.xlu0 %426
    %v428 = vrsqrt.pop %v425
    %v429 = vmul.f32 %v425, %v428
    %vm430 = vcmp.eq.f32.partialorder %v425, inf
    %v431 = vsel %vm430, %v425, %v429
    %vm432 = vcmp.eq.f32.partialorder %v425, 0.0
    %v433 = vand.u32 %v425, 2147483648
    %v434 = vsel %vm432, %v433, %v431
    %v435 = vrsqrt.pop %v427
    %v436 = vmul.f32 %v427, %v435
    %vm437 = vcmp.eq.f32.partialorder %v427, inf
    %v438 = vsel %vm437, %v427, %v436
    %vm439 = vcmp.eq.f32.partialorder %v427, 0.0
    %v440 = vand.u32 %v427, 2147483648
    %v441 = vsel %vm439, %v440, %v438
    %v442 = vmax.f32 %v434, 1e-05
    %v443 = vmax.f32 %v441, 1e-05
    %v444 = vtanh.pop %v442
    %v445 = vtanh.pop %v443
    %v446 = vrcp.pop %v442
    %v447 = vrcp.pop %v443
    %v448 = vmul.f32 %v444, %v446
    %v449 = vmul.f32 %v445, %v447
    %v450 = vmul.f32 %v420, %v448
    %v451 = vmul.f32 %v421, %v449
    %v452 = vmul.f32 %v448, %v448
    %v453 = vmul.f32 %v449, %v449
    %v454 = vmul.f32 %v425, %v452
    %v455 = vmul.f32 %v427, %v453
    %v456 = vrsqrt.pop %v454
    %v457 = vmul.f32 %v454, %v456
    %vm458 = vcmp.eq.f32.partialorder %v454, inf
    %v459 = vsel %vm458, %v454, %v457
    %vm460 = vcmp.eq.f32.partialorder %v454, 0.0
    %v461 = vand.u32 %v454, 2147483648
    %v462 = vsel %vm460, %v461, %v459
    %v463 = vrsqrt.pop %v455
    %v464 = vmul.f32 %v455, %v463
    %vm465 = vcmp.eq.f32.partialorder %v455, inf
    %v466 = vsel %vm465, %v455, %v464
    %vm467 = vcmp.eq.f32.partialorder %v455, 0.0
    %v468 = vand.u32 %v455, 2147483648
    %v469 = vsel %vm467, %v468, %v466
    %v470 = vmax.f32 %v462, 1e-05
    %v471 = vmax.f32 %v469, 1e-05
    %vm472 = vcmp.gt.f32.partialorder %v470, 0.996
    %vm473 = vcmp.gt.f32.partialorder %v471, 0.996
    %v474 = vrcp.pop %v470
    %v475 = vrcp.pop %v471
    %v476 = vmul.f32 %v474, 0.996
    %v477 = vmul.f32 %v475, 0.996
    %v478 = vsel %vm472, %v476, 1.0
    %v479 = vsel %vm473, %v477, 1.0
    %v480 = vmul.f32 %v450, %v478
    %v481 = vmul.f32 %v451, %v479
    %v482 = vmul.f32 %v478, %v478
    %v483 = vmul.f32 %v479, %v479
    %v484 = vmul.f32 %v454, %v482
    %v485 = vmul.f32 %v455, %v483
    %v486 = vrsqrt.pop %v484
    %v487 = vmul.f32 %v484, %v486
    %vm488 = vcmp.eq.f32.partialorder %v484, inf
    %v489 = vsel %vm488, %v484, %v487
    %vm490 = vcmp.eq.f32.partialorder %v484, 0.0
    %v491 = vand.u32 %v484, 2147483648
    %v492 = vsel %vm490, %v491, %v489
    %v493 = vrsqrt.pop %v485
    %v494 = vmul.f32 %v485, %v493
    %vm495 = vcmp.eq.f32.partialorder %v485, inf
    %v496 = vsel %vm495, %v485, %v494
    %vm497 = vcmp.eq.f32.partialorder %v485, 0.0
    %v498 = vand.u32 %v485, 2147483648
    %v499 = vsel %vm497, %v498, %v496
    %v500 = vmax.f32 %v492, 1e-05
    %v501 = vmax.f32 %v499, 1e-05
    %v502 = vmax.f32 %v500, -0.9999999
    %v503 = vmax.f32 %v501, -0.9999999
    %v504 = vmin.f32 %v502, 0.9999999
    %v505 = vmin.f32 %v503, 0.9999999
    %v506 = vadd.f32 %v504, 1.0
    %v507 = vadd.f32 %v505, 1.0
    %v508 = vsub.f32 1.0, %v504
    %v509 = vsub.f32 1.0, %v505
    %v510 = vrcp.pop %v508
    %v511 = vrcp.pop %v509
    %v512 = vmul.f32 %v508, %v510
    %v513 = vmul.f32 %v509, %v511
    %v514 = vsub.f32 2.0, %v512
    %v515 = vsub.f32 2.0, %v513
    %v516 = vmul.f32 %v510, %v514
    %v517 = vmul.f32 %v511, %v515
    %v518 = vmul.f32 %v506, %v516
    %v519 = vmul.f32 %v507, %v517
    %v520 = vlog2.pop %v518
    %v521 = vmul.f32 %v520, 0.6931472
    %v522 = vlog2.pop %v519
    %v523 = vmul.f32 %v522, 0.6931472
    %v524 = vmul.f32 %v521, 0.5
    %v525 = vmul.f32 %v523, 0.5
    %v526 = vrcp.pop %v500
    %v527 = vrcp.pop %v501
    %v528 = vmul.f32 %v524, %v526
    %v529 = vmul.f32 %v525, %v527
    %v530 = vmul.f32 %v480, %v528
    %v531 = vmul.f32 %v481, %v529
    %532 = vadd.xlane.f32.xlu0 %v530
    %v533 = vpop.xlane.xlu0 %532
    %534 = vadd.xlane.f32.xlu0 %v531
    %v535 = vpop.xlane.xlu0 %534
    %v536 = vmul.f32 %v533, 0.03125
    %v537 = vmul.f32 %v535, 0.03125
    %v538 = vsub.f32 %v530, %v536
    %v539 = vsub.f32 %v531, %v537
    %v540 = vmul.f32 %v538, %v97
    %v541 = vmul.f32 %v539, %v97
    %v542 = vmul.f32 %v540, %v540
    %v543 = vmul.f32 %v541, %v541
    %544 = vadd.xlane.f32.xlu0 %v542
    %v545 = vpop.xlane.xlu0 %544
    %546 = vadd.xlane.f32.xlu0 %v543
    %v547 = vpop.xlane.xlu0 %546
    %v548 = vmul.f32 %v545, 0.03125
    %v549 = vmul.f32 %v547, 0.03125
    %v550 = vadd.f32 %v548, 1e-05
    %v551 = vadd.f32 %v549, 1e-05
    %v552 = vrsqrt.pop %v550
    %v553 = vrsqrt.pop %v551
    %v554 = vmul.f32 %v540, %v552
    %v555 = vmul.f32 %v541, %v553
    %v557 = vlaneseq
    %v558 = vshrl.u32 %v557, 7
    %v559 = vsub.s32 0, %v558
    %v560 = vrot.slane %v90, %v559
    %v562 = vmul.f32 %v554, %v560
    %v563 = vmul.f32 %v555, %v560
    %v565 = vlaneseq
    %v566 = vshrl.u32 %v565, 7
    %v567 = vsub.s32 0, %v566
    %v568 = vrot.slane %v91, %v567
    %v570 = vadd.f32 %v562, %v568
    %v571 = vadd.f32 %v563, %v568
    %v572 = vmul.f32 %v570, %v570
    %v573 = vmul.f32 %v571, %v571
    %574 = vadd.xlane.f32.xlu0 %v572
    %v575 = vpop.xlane.xlu0 %574
    %576 = vadd.xlane.f32.xlu0 %v573
    %v577 = vpop.xlane.xlu0 %576
    %v578 = vrsqrt.pop %v575
    %v579 = vmul.f32 %v575, %v578
    %vm580 = vcmp.eq.f32.partialorder %v575, inf
    %v581 = vsel %vm580, %v575, %v579
    %vm582 = vcmp.eq.f32.partialorder %v575, 0.0
    %v583 = vand.u32 %v575, 2147483648
    %v584 = vsel %vm582, %v583, %v581
    %v585 = vrsqrt.pop %v577
    %v586 = vmul.f32 %v577, %v585
    %vm587 = vcmp.eq.f32.partialorder %v577, inf
    %v588 = vsel %vm587, %v577, %v586
    %vm589 = vcmp.eq.f32.partialorder %v577, 0.0
    %v590 = vand.u32 %v577, 2147483648
    %v591 = vsel %vm589, %v590, %v588
    %v592 = vmax.f32 %v584, 1e-05
    %v593 = vmax.f32 %v591, 1e-05
    %v594 = vtanh.pop %v592
    %v595 = vtanh.pop %v593
    %v596 = vrcp.pop %v592
    %v597 = vrcp.pop %v593
    %v598 = vmul.f32 %v594, %v596
    %v599 = vmul.f32 %v595, %v597
    %v600 = vmul.f32 %v570, %v598
    %v601 = vmul.f32 %v571, %v599
    %v602 = vmul.f32 %v598, %v598
    %v603 = vmul.f32 %v599, %v599
    %v604 = vmul.f32 %v575, %v602
    %v605 = vmul.f32 %v577, %v603
    %v606 = vrsqrt.pop %v604
    %v607 = vmul.f32 %v604, %v606
    %vm608 = vcmp.eq.f32.partialorder %v604, inf
    %v609 = vsel %vm608, %v604, %v607
    %vm610 = vcmp.eq.f32.partialorder %v604, 0.0
    %v611 = vand.u32 %v604, 2147483648
    %v612 = vsel %vm610, %v611, %v609
    %v613 = vrsqrt.pop %v605
    %v614 = vmul.f32 %v605, %v613
    %vm615 = vcmp.eq.f32.partialorder %v605, inf
    %v616 = vsel %vm615, %v605, %v614
    %vm617 = vcmp.eq.f32.partialorder %v605, 0.0
    %v618 = vand.u32 %v605, 2147483648
    %v619 = vsel %vm617, %v618, %v616
    %v620 = vmax.f32 %v612, 1e-05
    %v621 = vmax.f32 %v619, 1e-05
    %vm622 = vcmp.gt.f32.partialorder %v620, 0.996
    %vm623 = vcmp.gt.f32.partialorder %v621, 0.996
    %v624 = vrcp.pop %v620
    %v625 = vrcp.pop %v621
    %v626 = vmul.f32 %v624, 0.996
    %v627 = vmul.f32 %v625, 0.996
    %v628 = vsel %vm622, %v626, 1.0
    %v629 = vsel %vm623, %v627, 1.0
    %v630 = vmul.f32 %v600, %v628
    %v631 = vmul.f32 %v601, %v629
    %v632 = vmul.f32 %v628, %v628
    %v633 = vmul.f32 %v629, %v629
    %v634 = vmul.f32 %v604, %v632
    %v635 = vmul.f32 %v605, %v633
    %v636 = vld [vmem:[#allocation9] sm:$0xf]
    %v637 = vld [vmem:[#allocation9 + $0x4] sm:$0xf]
    %v638 = vld [vmem:[#allocation9 + $0x8] sm:$0xf]
    %v639 = vld [vmem:[#allocation9 + $0xc] sm:$0xf]
    %v640 = vld [vmem:[#allocation9 + $0x10] sm:$0xf]
    %v641 = vld [vmem:[#allocation9 + $0x14] sm:$0xf]
    %v642 = vld [vmem:[#allocation9 + $0x18] sm:$0xf]
    %v643 = vld [vmem:[#allocation9 + $0x1c] sm:$0xf]
    %v644 = vld [vmem:[#allocation9 + $0x20] sm:$0xf]
    %v645 = vld [vmem:[#allocation9 + $0x24] sm:$0xf]
    %v646 = vld [vmem:[#allocation9 + $0x28] sm:$0xf]
    %v647 = vld [vmem:[#allocation9 + $0x2c] sm:$0xf]
    %v648 = vld [vmem:[#allocation9 + $0x30] sm:$0xf]
    %v649 = vld [vmem:[#allocation9 + $0x34] sm:$0xf]
    %v650 = vld [vmem:[#allocation9 + $0x38] sm:$0xf]
    %v651 = vld [vmem:[#allocation9 + $0x3c] sm:$0xf]
    %v652 = vld [vmem:[%s7] sm:$0x1]
    %s653 = sld [smem:[#allocation3 + $0x1]]
    %vm654 = vcmp.lt.s32.totalorder %v94, 16
    %v655 = vsel %vm654, 1, 0
    %v656 = vcvt.s32.f32 %v655
    %v657 = vrsqrt.pop %v634
    %v658 = vmul.f32 %v634, %v657
    %vm659 = vcmp.eq.f32.partialorder %v634, inf
    %v660 = vsel %vm659, %v634, %v658
    %vm661 = vcmp.eq.f32.partialorder %v634, 0.0
    %v662 = vand.u32 %v634, 2147483648
    %v663 = vsel %vm661, %v662, %v660
    %v664 = vrsqrt.pop %v635
    %v665 = vmul.f32 %v635, %v664
    %vm666 = vcmp.eq.f32.partialorder %v635, inf
    %v667 = vsel %vm666, %v635, %v665
    %vm668 = vcmp.eq.f32.partialorder %v635, 0.0
    %v669 = vand.u32 %v635, 2147483648
    %v670 = vsel %vm668, %v669, %v667
    %v671 = vmax.f32 %v663, 1e-05
    %v672 = vmax.f32 %v670, 1e-05
    %v673 = vpack.c.bf16 %v631, %v630
    %v690 = vunpack.c.l.b16 %v636
    %v691 = vunpack.c.l.b16 %v637
    %v692 = vunpack.c.l.b16 %v638
    %v693 = vunpack.c.l.b16 %v639
    %v694 = vunpack.c.l.b16 %v640
    %v695 = vunpack.c.l.b16 %v641
    %v696 = vunpack.c.l.b16 %v642
    %v697 = vunpack.c.l.b16 %v643
    %v698 = vunpack.c.l.b16 %v644
    %v699 = vunpack.c.l.b16 %v645
    %v700 = vunpack.c.l.b16 %v646
    %v701 = vunpack.c.l.b16 %v647
    %v702 = vunpack.c.l.b16 %v648
    %v703 = vunpack.c.l.b16 %v649
    %v704 = vunpack.c.l.b16 %v650
    %v705 = vunpack.c.l.b16 %v651
    %v706 = vpack.c.b16 %v691, %v690
    %v707 = vpack.c.b16 %v693, %v692
    %v708 = vpack.c.b16 %v695, %v694
    %v709 = vpack.c.b16 %v697, %v696
    %v710 = vpack.c.b16 %v699, %v698
    %v711 = vpack.c.b16 %v701, %v700
    %v712 = vpack.c.b16 %v703, %v702
    %v713 = vpack.c.b16 %v705, %v704
    %722 = vmatprep.subr.bf16.mxu0 0
    %723 = vmatpush1.bf16.msra.mxu0 %v706
    %724 = vmatprep.subr.bf16.mxu0 0
    %725 = vmatpush1.bf16.msra.mxu0 %v707
    %726 = vmatprep.subr.bf16.mxu0 0
    %727 = vmatpush1.bf16.msra.mxu0 %v708
    %728 = vmatprep.subr.bf16.mxu0 0
    %729 = vmatpush1.bf16.msra.mxu0 %v709
    %730 = vmatprep.subr.bf16.mxu0 0
    %731 = vmatpush1.bf16.msra.mxu0 %v710
    %732 = vmatprep.subr.bf16.mxu0 0
    %733 = vmatpush1.bf16.msra.mxu0 %v711
    %734 = vmatprep.subr.bf16.mxu0 0
    %735 = vmatpush1.bf16.msra.mxu0 %v712
    %736 = vmatprep.subr.bf16.mxu0 0
    %737 = vmatpush1.bf16.msra.mxu0 %v713
    %738 = vmatprep.subr.bf16.mxu0 0
    %739 = vmatpush1.bf16.msra.mxu0 0
    %740 = vmatprep.subr.bf16.mxu0 0
    %741 = vmatpush1.bf16.msra.mxu0 0
    %742 = vmatprep.subr.bf16.mxu0 0
    %743 = vmatpush1.bf16.msra.mxu0 0
    %744 = vmatprep.subr.bf16.mxu0 0
    %745 = vmatpush1.bf16.msra.mxu0 0
    %746 = vmatprep.subr.bf16.mxu0 0
    %747 = vmatpush1.bf16.msra.mxu0 0
    %748 = vmatprep.subr.bf16.mxu0 0
    %749 = vmatpush1.bf16.msra.mxu0 0
    %750 = vmatprep.subr.bf16.mxu0 0
    %751 = vmatpush1.bf16.msra.mxu0 0
    %752 = vmatprep.subr.bf16.mxu0 0
    %753 = vmatpush1.bf16.msra.mxu0 0
    %754 = vmatprep.mubr.bf16.mxu0 0
    %755 = vmatmul.mubr.bf16.gmra.mrb[0].mxu0 %v673
    %v756 = vpop.f32.mrb[0].mxu0
    %v757 = vadd.f32 0.0, %v756
    %v758 = vpop.f32.mrb[0].mxu0
    %v759 = vpop.f32.mrb[0].mxu0
    %v760 = vadd.f32 0.0, %v759
    %v761 = vpop.f32.mrb[0].mxu0
    %762 = vdwg.mxu0
    %v763 = vmul.f32 %v757, %v656
    %v764 = vmul.f32 %v760, %v656
    %v765 = vmul.f32 %v763, %v763
    %v766 = vmul.f32 %v764, %v764
    %767 = vadd.xlane.f32.xlu0 %v765
    %v768 = vpop.xlane.xlu0 %767
    %769 = vadd.xlane.f32.xlu0 %v766
    %v770 = vpop.xlane.xlu0 %769
    %v771 = vrsqrt.pop %v768
    %v772 = vmul.f32 %v768, %v771
    %vm773 = vcmp.eq.f32.partialorder %v768, inf
    %v774 = vsel %vm773, %v768, %v772
    %vm775 = vcmp.eq.f32.partialorder %v768, 0.0
    %v776 = vand.u32 %v768, 2147483648
    %v777 = vsel %vm775, %v776, %v774
    %v778 = vrsqrt.pop %v770
    %v779 = vmul.f32 %v770, %v778
    %vm780 = vcmp.eq.f32.partialorder %v770, inf
    %v781 = vsel %vm780, %v770, %v779
    %vm782 = vcmp.eq.f32.partialorder %v770, 0.0
    %v783 = vand.u32 %v770, 2147483648
    %v784 = vsel %vm782, %v783, %v781
    %v785 = vmax.f32 %v777, 1e-05
    %v786 = vmax.f32 %v784, 1e-05
    %v787 = vrcp.pop %v671
    %v788 = vrcp.pop %v672
    %v789 = vmul.f32 %v785, %v787
    %v790 = vmul.f32 %v786, %v788
    %v791 = vmax.f32 %v671, -0.9999999
    %v792 = vmax.f32 %v672, -0.9999999
    %v793 = vmin.f32 %v791, 0.9999999
    %v794 = vmin.f32 %v792, 0.9999999
    %v795 = vadd.f32 %v793, 1.0
    %v796 = vadd.f32 %v794, 1.0
    %v797 = vsub.f32 1.0, %v793
    %v798 = vsub.f32 1.0, %v794
    %v799 = vrcp.pop %v797
    %v800 = vrcp.pop %v798
    %v801 = vmul.f32 %v797, %v799
    %v802 = vmul.f32 %v798, %v800
    %v803 = vsub.f32 2.0, %v801
    %v804 = vsub.f32 2.0, %v802
    %v805 = vmul.f32 %v799, %v803
    %v806 = vmul.f32 %v800, %v804
    %v807 = vmul.f32 %v795, %v805
    %v808 = vmul.f32 %v796, %v806
    %v809 = vlog2.pop %v807
    %v810 = vmul.f32 %v809, 0.6931472
    %v811 = vlog2.pop %v808
    %v812 = vmul.f32 %v811, 0.6931472
    %v813 = vmul.f32 %v810, 0.5
    %v814 = vmul.f32 %v812, 0.5
    %v815 = vmul.f32 %v789, %v813
    %v816 = vmul.f32 %v790, %v814
    %v817 = vtanh.pop %v815
    %v818 = vtanh.pop %v816
    %v819 = vrcp.pop %v785
    %v820 = vrcp.pop %v786
    %v821 = vmul.f32 %v817, %v819
    %v822 = vmul.f32 %v818, %v820
    %vm823 = vcmp.eq.f32.partialorder %v768, 0.0
    %vm824 = vcmp.eq.f32.partialorder %v770, 0.0
    %v825 = vsel %vm823, 0.0, %v821
    %v826 = vsel %vm824, 0.0, %v822
    %v827 = vmul.f32 %v825, %v763
    %v828 = vmul.f32 %v826, %v764
    %v829 = vmul.f32 %v825, %v825
    %v830 = vmul.f32 %v826, %v826
    %v831 = vmul.f32 %v829, %v768
    %v832 = vmul.f32 %v830, %v770
    %v833 = vmul.f32 %v825, %v757
    %v834 = vmul.f32 %v826, %v760
    %v835 = vmul.f32 %v833, 2.0
    %v836 = vmul.f32 %v834, 2.0
    %v837 = vadd.f32 %v835, 1.0
    %v838 = vadd.f32 %v836, 1.0
    %v839 = vstv %s653
    %v840 = vadd.f32 %v837, %v839
    %v841 = vadd.f32 %v838, %v839
    %v842 = vsub.f32 1.0, %v831
    %v843 = vsub.f32 1.0, %v832
    %v844 = vmul.f32 %v831, %v839
    %v845 = vmul.f32 %v832, %v839
    %v846 = vadd.f32 %v837, %v844
    %v847 = vadd.f32 %v838, %v845
    %v848 = vmax.f32 %v846, 1e-05
    %v849 = vmax.f32 %v847, 1e-05
    %v850 = vrcp.pop %v848
    %v851 = vrcp.pop %v849
    %v852 = vmul.f32 %v848, %v850
    %v853 = vmul.f32 %v849, %v851
    %v854 = vsub.f32 2.0, %v852
    %v855 = vsub.f32 2.0, %v853
    %v856 = vmul.f32 %v850, %v854
    %v857 = vmul.f32 %v851, %v855
    %859 = vset.pattern.permute.xlu0 127
    %860 = vperm.xlu0 %859, %v840
    %v861 = vpop.permute.xlu0 %860
    %864 = vset.pattern.permute.xlu0 127
    %865 = vperm.xlu0 %864, %v841
    %v866 = vpop.permute.xlu0 %865
    %v868 = vmul.f32 %v861, %v827
    %v869 = vmul.f32 %v866, %v828
    %v871 = vlaneseq
    %v872 = vshrl.u32 %v871, 7
    %v873 = vsub.s32 0, %v872
    %v874 = vrot.slane %v652, %v873
    %v876 = vmul.f32 %v842, %v874
    %v877 = vmul.f32 %v843, %v874
    %v878 = vadd.f32 %v868, %v876
    %v879 = vadd.f32 %v869, %v877
    %881 = vset.pattern.permute.xlu0 127
    %882 = vperm.xlu0 %881, %v856
    %v883 = vpop.permute.xlu0 %882
    %886 = vset.pattern.permute.xlu0 127
    %887 = vperm.xlu0 %886, %v857
    %v888 = vpop.permute.xlu0 %887
    %v890 = vmul.f32 %v878, %v883
    %v891 = vmul.f32 %v879, %v888
    %v892 = vmul.f32 %v840, %v840
    %v893 = vmul.f32 %v841, %v841
    %v894 = vmul.f32 %v892, %v831
    %v895 = vmul.f32 %v893, %v832
    %v896 = vmul.f32 %v840, 2.0
    %v897 = vmul.f32 %v841, 2.0
    %v898 = vmul.f32 %v896, %v842
    %v899 = vmul.f32 %v897, %v843
    %v900 = vmul.f32 %v898, %v833
    %v901 = vmul.f32 %v899, %v834
    %v902 = vadd.f32 %v894, %v900
    %v903 = vadd.f32 %v895, %v901
    %v904 = vmul.f32 %v842, %v842
    %v905 = vmul.f32 %v843, %v843
    %v906 = vmul.f32 %v904, %v839
    %v907 = vmul.f32 %v905, %v839
    %v908 = vadd.f32 %v902, %v906
    %v909 = vadd.f32 %v903, %v907
    %v910 = vmul.f32 %v856, %v856
    %v911 = vmul.f32 %v857, %v857
    %v912 = vmul.f32 %v908, %v910
    %v913 = vmul.f32 %v909, %v911
    %v914 = vmax.f32 %v912, 0.0
    %v915 = vmax.f32 %v913, 0.0
    %v916 = vrsqrt.pop %v914
    %v917 = vmul.f32 %v914, %v916
    %vm918 = vcmp.eq.f32.partialorder %v914, inf
    %v919 = vsel %vm918, %v914, %v917
    %vm920 = vcmp.eq.f32.partialorder %v914, 0.0
    %v921 = vand.u32 %v914, 2147483648
    %v922 = vsel %vm920, %v921, %v919
    %v923 = vrsqrt.pop %v915
    %v924 = vmul.f32 %v915, %v923
    %vm925 = vcmp.eq.f32.partialorder %v915, inf
    %v926 = vsel %vm925, %v915, %v924
    %vm927 = vcmp.eq.f32.partialorder %v915, 0.0
    %v928 = vand.u32 %v915, 2147483648
    %v929 = vsel %vm927, %v928, %v926
    %v930 = vmax.f32 %v922, 1e-05
    %v931 = vmax.f32 %v929, 1e-05
    %vm932 = vcmp.gt.f32.partialorder %v930, 0.996
    %vm933 = vcmp.gt.f32.partialorder %v931, 0.996
    %v934 = vrcp.pop %v930
    %v935 = vrcp.pop %v931
    %v936 = vmul.f32 %v934, 0.996
    %v937 = vmul.f32 %v935, 0.996
    %v938 = vsel %vm932, %v936, 1.0
    %v939 = vsel %vm933, %v937, 1.0
    %941 = vset.pattern.permute.xlu0 127
    %942 = vperm.xlu0 %941, %v938
    %v943 = vpop.permute.xlu0 %942
    %946 = vset.pattern.permute.xlu0 127
    %947 = vperm.xlu0 %946, %v939
    %v948 = vpop.permute.xlu0 %947
    %v950 = vmul.f32 %v890, %v943
    %v951 = vmul.f32 %v891, %v948
    %952 = vst [vmem:[#allocation10] sm:$0xff] %v950
    %953 = vst [vmem:[#allocation10 + $0x8] sm:$0xff] %v951
    // Predicated region
    $region42: #{tpu_custom_call.1} parent=1 // pred_check
      _
    $region43: #{tpu_custom_call.1} parent=1 // pred_check_branch
      %955 = sbr.rel (0) target = $region45
    $region44: #{tpu_custom_call.1} parent=1 // pred_region
      %s957 = ssub.s32 256, 256
      %958 = vsyncadd [#allocation6], %s957
      %s959 = sshll.u32 [#allocation10], 4
      %s960 = int_to_ptr.vmem [resolvable:$true] %s959
      %965 = dma.vmem_to_hbm [thread:$0]  %s960, 256, %s8, [#allocation6], 128, 128, 8
    $region45: #{tpu_custom_call.1} parent=1 // pred_fallthru
      _
    // Predicated region
    $region46: #{tpu_custom_call.1} parent=1 // pred_check
      _
    $region47: #{tpu_custom_call.1} parent=1 // pred_check_branch
      %967 = sbr.rel (0) target = $region49
    $region48: #{tpu_custom_call.1} parent=1 // pred_region
      %968 = dma.done [#allocation6], 256
    $region49: #{tpu_custom_call.1} parent=1 // pred_fallthru
      _
    %969 = vsyncpa [#allocation5], 1
    %970 = vsyncpa [#allocation8], 1
    %971 = vsyncpa [#allocation6], 1

</llo_original>
